<compile_context>
chip_gen: v5e
topology: v5e:2x2
jax: 0.10.0
libtpu: 0.0.40
codegen_flags: <defaults>
</compile_context>

<pallas_src>
import functools
import math

import jax
import jax.numpy as jnp
from jax import lax
from jax.experimental import pallas as pl
from jax.experimental.pallas import tpu as pltpu

HIDDEN = 768  # fixed by the module (weights are 768x768)


def _round_up(x, m):
    return (x + m - 1) // m * m


def _pick_batch_block(B, L_pad, rows_cap):
    """Largest divisor of B with rows <= rows_cap, preferring >=2 grid steps and
    MXU-friendly (256-multiple) row counts."""
    divisors = [d for d in range(1, B + 1) if B % d == 0]
    fits = [d for d in divisors if d * L_pad <= rows_cap]
    if not fits:
        return 1  # L_pad alone exceeds the cap; one batch per step is the best we can do
    multi = [d for d in fits if B // d >= 2]   # keep >=2 grid steps (megacore / pipelining)
    pool = multi if multi else fits
    def score(d):
        rows = d * L_pad
        return (rows % 256 == 0, rows % 128 == 0, rows)
    return max(pool, key=score)


def _co_attention_kernel(x_ref, t_ref, w_ref, o_ref, *, l_valid, key_tile):
    # x_ref: (BB*L_pad, D)  H folded batch-major into the matmul M dim
    # t_ref: (BB, L_pad, D) T for the same batch slice
    # w_ref: (D, D)         weights, grid-invariant (DMA'd once)
    # o_ref: (1, BB, D)     output block (last two dims == full array dims)
    BB, L_pad, D = t_ref.shape

    x = x_ref[...]                       # (BB*L_pad, D)
    w = w_ref[...]                       # (D, D)

    # z1 = X @ W on the MXU, f32 accumulation; M = BB*L_pad (batch folded in).
    z1 = jnp.dot(x, w, preferred_element_type=jnp.float32)        # (BB*L_pad, D) f32
    # L_pad % 8 == 0 -> pure sublane split, no VMEM copy.
    z1 = z1.reshape(BB, L_pad, D).astype(x.dtype)                 # (BB, L_pad, D)

    ht = jnp.zeros((BB, D), jnp.float32)

    # Key-axis tiling: the MaxPool is over the *row* axis, so each key column's max is
    # independent -> no running max; only a (BB, L_pad, key_tile) z2 slab and a
    # (BB, key_tile, D) f32 T tile are live at a time.
    for k0 in range(0, L_pad, key_tile):
        ksz = min(key_tile, L_pad - k0)
        t_chunk = t_ref[:, k0:k0 + ksz, :]                        # (BB, ksz, D)

        # z2[b, l, k] = sum_d z1[b, l, d] * T[b, k, d]  (NT contraction, no transpose).
        z2 = lax.dot_general(
            z1, t_chunk,
            dimension_numbers=(((2,), (2,)), ((0,), (0,))),
            preferred_element_type=jnp.float32)                   # (BB, L_pad, ksz) f32

        if l_valid != L_pad:
            # Padded rows must not participate in the max (padded *keys* are harmless:
            # they produce alpha = tanh(0) = 0 and T rows of zeros).
            row_ids = lax.broadcasted_iota(jnp.int32, z2.shape, 1)
            z2 = jnp.where(row_ids < l_valid, z2, -jnp.inf)

        # MaxPool2d((L,1)) == max over axis=1; tanh is monotonic -> tanh(max)==max(tanh):
        # L transcendentals per key tile instead of L*L.
        alpha = jnp.tanh(jnp.max(z2, axis=1))                     # (BB, ksz) f32

        # HT[b, d] += sum_k alpha[b, k] * T[b, k, d]  (VPU multiply + sublane reduce);
        # only this key tile of T is ever promoted to f32.
        ht = ht + jnp.sum(alpha[:, :, None] * t_chunk.astype(jnp.float32), axis=1)

    o_ref[...] = ht[None].astype(o_ref.dtype)


def co_attention(H, T, W, *, compute_dtype=jnp.bfloat16, batch_block=None,
                 rows_cap=1024, key_tile=512):
    """H, T: (B, L, 768) float32; W: (768, 768) float32.  Returns (B, 768) float32.

    compute_dtype: dtype fed to the MXU (bf16 by default; accumulation is f32).
                   Use jnp.float32 for exact PyTorch-equivalent numerics.
    batch_block:   batches per grid step (defaults to a divisor of B that keeps
                   rows <= rows_cap and num_blocks >= 2).
    """
    B, L, D = H.shape
    assert D == HIDDEN and T.shape == (B, L, D) and W.shape == (D, D)

    # Pad the sequence axis: multiple of 8 (sublane) always, multiple of 128 (lane,
    # for the z2 key axis) at production lengths.  Key padding contributes exactly 0;
    # padded rows are masked to -inf inside the kernel before the max.
    L_pad = _round_up(L, 128) if L >= 128 else _round_up(L, 8)
    if L_pad != L:
        pad = ((0, 0), (0, L_pad - L), (0, 0))
        H = jnp.pad(H, pad)
        T = jnp.pad(T, pad)

    if batch_block is None:
        batch_block = _pick_batch_block(B, L_pad, rows_cap)
    assert B % batch_block == 0
    num_blocks = B // batch_block
    rows = batch_block * L_pad                      # % 8 == 0 since L_pad % 8 == 0
    kt = min(int(key_tile), L_pad)

    # Fold batch into the M dim of the first matmul; cast once in the wrapper so the
    # arrays shipped HBM->VMEM are half size (bf16).
    x = H.reshape(B * L_pad, D).astype(compute_dtype)
    t = T.astype(compute_dtype)
    w = W.astype(compute_dtype)

    kernel = functools.partial(_co_attention_kernel, l_valid=L, key_tile=kt)

    itemsize = jnp.dtype(compute_dtype).itemsize
    cost = pl.CostEstimate(
        flops=int(2 * B * L_pad * D * D + 2 * B * L_pad * L_pad * D + 2 * B * L_pad * D),
        transcendentals=int(B * L_pad),
        bytes_accessed=int((2 * B * L_pad * D + D * D) * itemsize + B * D * 4),
    )

    out = pl.pallas_call(
        kernel,
        out_shape=jax.ShapeDtypeStruct((num_blocks, batch_block, D), H.dtype),
        grid_spec=pltpu.PrefetchScalarGridSpec(
            num_scalar_prefetch=0,
            grid=(num_blocks,),
            in_specs=[
                pl.BlockSpec((rows, D), lambda i: (i, 0)),                   # X = H as (B*L_pad, D)
                pl.BlockSpec((batch_block, L_pad, D), lambda i: (i, 0, 0)),  # T
                pl.BlockSpec((D, D), lambda i: (0, 0)),                      # W (grid-invariant)
            ],
            # Last two block dims equal the full array dims -> lane-dense, aligned for
            # any batch_block.
            out_specs=pl.BlockSpec((1, batch_block, D), lambda i: (i, 0, 0)),
        ),
        compiler_params=pltpu.CompilerParams(
            dimension_semantics=("parallel",),        # batch blocks shard across TCs
            vmem_limit_bytes=48 * 1024 * 1024,        # headroom over v5e's 16 MiB default,
                                                      # under v7x's 64 MiB physical
        ),
        cost_estimate=cost,
    )(x, t, w)

    return out.reshape(B, D)


def _reference_f32(H, T, W):
    """Exact f32 semantics of the PyTorch module."""
    z1 = jnp.einsum("bld,de->ble", H, W)
    z2 = jnp.einsum("ble,bke->blk", z1, T)
    C = jnp.tanh(z2)
    alpha = jnp.max(C, axis=1, keepdims=True)            # MaxPool2d((L,1))
    HT = jnp.einsum("blk,bkd->bld", alpha, T)
    return HT.reshape(H.shape[0], HIDDEN)


def _reference_bf16(H, T, W):
    """Reference mirroring the kernel's bf16-input / f32-accumulate numerics."""
    hb = H.astype(jnp.bfloat16).astype(jnp.float32)
    tb = T.astype(jnp.bfloat16).astype(jnp.float32)
    wb = W.astype(jnp.bfloat16).astype(jnp.float32)
    z1 = jnp.einsum("bld,de->ble", hb, wb)
    z1 = z1.astype(jnp.bfloat16).astype(jnp.float32)      # in-kernel requant of z1
    z2 = jnp.einsum("ble,bke->blk", z1, tb)
    alpha = jnp.tanh(jnp.max(z2, axis=1))                 # tanh(max) == max(tanh)
    return jnp.einsum("bk,bkd->bd", alpha, tb)


if __name__ == "__main__":
    key = jax.random.PRNGKey(0)
    k_h, k_t, k_w = jax.random.split(key, 3)

    B, L = 2, 8  # batch=2, seq len=8 (the module's `len` arg)

    H = jax.random.normal(k_h, (B, L, HIDDEN), dtype=jnp.float32)
    T = jax.random.normal(k_t, (B, L, HIDDEN), dtype=jnp.float32)

    # kaiming_uniform_(a=sqrt(5)) equivalent: bound = 1/sqrt(fan_in)
    bound = 1.0 / math.sqrt(HIDDEN)
    W = jax.random.uniform(k_w, (HIDDEN, HIDDEN), dtype=jnp.float32,
                           minval=-bound, maxval=bound)

    out = jax.block_until_ready(co_attention(H, T, W))
    assert out.shape == (B, HIDDEN)

    # Tight check against a reference that mirrors the kernel's bf16 numerics,
    # plus a looser semantic check against the exact f32 module math.
    ref_mirror = _reference_bf16(H, T, W)
    ref_exact = _reference_f32(H, T, W)
    assert jnp.allclose(out, ref_mirror, atol=5e-3, rtol=5e-3), "mismatch vs bf16-mirrored reference"
    assert jnp.allclose(out, ref_exact, atol=1e-1, rtol=1e-1), "mismatch vs f32 reference"

    # TODO(synk): the surrounding Roberta_CoAttention (RoBERTa embeddings/encoder layers,
    # dropout+Linear classifier, sigmoid) is out of scope for this kernel.
    print("KERNEL_OK")
</pallas_src>

<mosaic_0001>
module attributes {stable_mosaic.version = 11 : i64} {
  func.func @_co_attention_kernel(%arg0: i32, %arg1: memref<8x768xbf16, #tpu.memory_space<vmem>>, %arg2: memref<1x8x768xbf16, #tpu.memory_space<vmem>>, %arg3: memref<768x768xbf16, #tpu.memory_space<vmem>>, %arg4: memref<1x1x768xf32, #tpu.memory_space<vmem>>) attributes {dimension_semantics = [#tpu.dimension_semantics<parallel>], iteration_bounds = array<i64: 2>, scalar_prefetch = 0 : i64, scratch_operands = 0 : i64, tpu.core_type = #tpu.core_type<tc>, window_params = [{transform_indices = @transform_0, window_bounds = array<i64: 8, 768>}, {transform_indices = @transform_1, window_bounds = array<i64: 1, 8, 768>}, {pipeline_mode = #tpu.pipeline_mode<synchronous>, transform_indices = @transform_2, window_bounds = array<i64: 768, 768>}, {transform_indices = @transform_3, window_bounds = array<i64: 1, 1, 768>}]} {
    %c0 = arith.constant 0 : index
    %c0_0 = arith.constant 0 : index
    %0 = vector.load %arg1[%c0, %c0_0] : memref<8x768xbf16, #tpu.memory_space<vmem>>, vector<8x768xbf16>
    %c0_1 = arith.constant 0 : index
    %c0_2 = arith.constant 0 : index
    %1 = vector.load %arg3[%c0_1, %c0_2] : memref<768x768xbf16, #tpu.memory_space<vmem>>, vector<768x768xbf16>
    %cst = arith.constant dense<0.000000e+00> : vector<8x768xf32>
    %2 = tpu.matmul %0, %1, %cst {dimension_numbers = #tpu.dot_dimension_numbers<[1], [0], [0], [1], [0, 0, 1, 1], [], []>} : vector<8x768xbf16>, vector<768x768xbf16>, vector<8x768xf32> -> vector<8x768xf32>
    %3 = vector.shape_cast %2 : vector<8x768xf32> to vector<1x8x768xf32>
    %4 = arith.truncf %3 : vector<1x8x768xf32> to vector<1x8x768xbf16>
    %cst_3 = arith.constant 0.000000e+00 : f32
    %5 = vector.broadcast %cst_3 : f32 to vector<1x768xf32>
    %c0_4 = arith.constant 0 : index
    %c0_5 = arith.constant 0 : index
    %c0_6 = arith.constant 0 : index
    %6 = vector.load %arg2[%c0_4, %c0_5, %c0_6] : memref<1x8x768xbf16, #tpu.memory_space<vmem>>, vector<1x8x768xbf16>
    %cst_7 = arith.constant dense<0.000000e+00> : vector<1x8x8xf32>
    %7 = tpu.matmul %4, %6, %cst_7 {dimension_numbers = #tpu.dot_dimension_numbers<[2], [2], [1], [1], [0, 0, 0, 1, 1, 1], [0], [0]>} : vector<1x8x768xbf16>, vector<1x8x768xbf16>, vector<1x8x8xf32> -> vector<1x8x8xf32>
    %cst_8 = arith.constant dense<0xFF800000> : vector<1x8xf32>
    %8 = vector.multi_reduction <maximumf>, %7, %cst_8 [1] : vector<1x8x8xf32> to vector<1x8xf32>
    %9 = math.tanh %8 : vector<1x8xf32>
    %10 = vector.shape_cast %9 : vector<1x8xf32> to vector<1x8x1xf32>
    %11 = arith.extf %6 : vector<1x8x768xbf16> to vector<1x8x768xf32>
    %12 = vector.broadcast %10 : vector<1x8x1xf32> to vector<1x8x768xf32>
    %13 = arith.mulf %12, %11 : vector<1x8x768xf32>
    %cst_9 = arith.constant dense<0.000000e+00> : vector<1x768xf32>
    %14 = vector.multi_reduction <add>, %13, %cst_9 [1] : vector<1x8x768xf32> to vector<1x768xf32>
    %15 = arith.addf %5, %14 : vector<1x768xf32>
    %16 = vector.shape_cast %15 : vector<1x768xf32> to vector<1x1x768xf32>
    %c0_10 = arith.constant 0 : index
    %c0_11 = arith.constant 0 : index
    %c0_12 = arith.constant 0 : index
    %17 = vector.load %arg4[%c0_10, %c0_11, %c0_12] : memref<1x1x768xf32, #tpu.memory_space<vmem>>, vector<1x1x768xf32>
    tpu.vector_store %arg4[%c0_10, %c0_11, %c0_12], %16 {strides = array<i32>} : memref<1x1x768xf32, #tpu.memory_space<vmem>>, vector<1x1x768xf32>,
    return
  }
  func.func @transform_0(%arg0: i32) -> (i32, i32) {
    %c0_i32 = arith.constant 0 : i32
    %c0_i32_0 = arith.constant 0 : i32
    return %arg0, %c0_i32 : i32, i32
  }
  func.func @transform_1(%arg0: i32) -> (i32, i32, i32) {
    %c0_i32 = arith.constant 0 : i32
    %c0_i32_0 = arith.constant 0 : i32
    %c0_i32_1 = arith.constant 0 : i32
    return %arg0, %c0_i32, %c0_i32_0 : i32, i32, i32
  }
  func.func @transform_2(%arg0: i32) -> (i32, i32) {
    %c0_i32 = arith.constant 0 : i32
    %c0_i32_0 = arith.constant 0 : i32
    %c0_i32_1 = arith.constant 0 : i32
    return %c0_i32, %c0_i32_0 : i32, i32
  }
  func.func @transform_3(%arg0: i32) -> (i32, i32, i32) {
    %c0_i32 = arith.constant 0 : i32
    %c0_i32_0 = arith.constant 0 : i32
    %c0_i32_1 = arith.constant 0 : i32
    return %arg0, %c0_i32, %c0_i32_0 : i32, i32, i32
  }
}

</mosaic_0001>

<llo_original>
// kernel: tpu_custom_call.1
$region0: #{tpu_custom_call.1}
  #allocation0 [shape = 'u32[]', space=smem, size = 0x4, offset = 0x4, fixed_abs, tag = 'smem constant byte address 0x4 - core index']
  #allocation1 [shape = 'u32[72,128]{1,0:T(1,128)}', space=vmem, size = 0x9000, scoped, tag = 'internal scratch']
  %s0 = inlined_call_operand.hbm [shape: bf16[16,768], index: 0, kind: input, shape index: {}]
  %s1 = inlined_call_operand.hbm [shape: bf16[2,8,768], index: 1, kind: input, shape index: {}]
  %s2 = inlined_call_operand.hbm [shape: bf16[768,768], index: 2, kind: input, shape index: {}]
  %s3 = inlined_call_operand.hbm [shape: f32[2,1,768], index: 3, kind: output, shape index: {}]
  %s4 = sld [smem:[#allocation0]]
  $region57: #{tpu_custom_call.1} parent=0
    _
  %s6 = ssub.s32 1, %s4
  %s7 = scalar_select 0, %s6, %s4
  $region1: #{tpu_custom_call.1} parent=0
    #allocation2 [shape = 'u8[24576]{0}', space=vmem, size = 0x6000, scoped, tag = 'input window, operand 0']
    #allocation3 [shape = 's32[2]{0}', space=sflag, size = 0x8, scoped, tag = 'scoped memory for tpu_custom_call.1']
    #allocation4 [shape = 's32[2]{0}', space=sflag, size = 0x8, scoped, tag = 'scoped memory for tpu_custom_call.1']
    #allocation5 [shape = 'u8[24576]{0}', space=vmem, size = 0x6000, scoped, tag = 'input window, operand 1']
    #allocation6 [shape = 's32[2]{0}', space=sflag, size = 0x8, scoped, tag = 'scoped memory for tpu_custom_call.1']
    #allocation7 [shape = 'u8[1179648]{0}', space=vmem, size = 0x120000, scoped, tag = 'input window, operand 2, single buffered']
    #allocation8 [shape = 'u8[6144]{0}', space=vmem, size = 0x1800, scoped, tag = 'output window, operand 0']
    %8 = vsyncpa [#allocation3], 0
    %s9 = scalar_lea.sflag [#allocation3], 1
    %10 = vsyncpa %s9, 0
    %11 = vsyncpa [#allocation6], 0
    %s12 = scalar_lea.sflag [#allocation6], 1
    %13 = vsyncpa %s12, 0
    %14 = vsyncpa [#allocation4], 0
    %s15 = scalar_lea.sflag [#allocation4], 1
    %16 = vsyncpa %s15, 0
    loop: start=0, step=1, limit=4
    $region2: #{tpu_custom_call.1} parent=1 // loop_pre_header
      _
    $region3: #{tpu_custom_call.1} parent=1 // loop_header
      %s18 = sphi 0, %s22
      %p19 = scmp.ge.s32.totalorder %s18, 4
      %s28 = sphi 0, %s30
      %s31 = sphi 0, %s28
      %s32 = sphi 0, %s31
      %s48 = sphi 0, %s32
      %s54 = sphi 0, %s56
      %s57 = sphi 0, %s54
      %s58 = sphi 0, %s57
      %s74 = sphi 0, %s58
      %s78 = sphi 0, %s78
      %s80 = sphi 0, %s78
      %s81 = sphi 0, %s80
      %s95 = sphi 0, %s81
      %s101 = sphi 0, %s103
      %s104 = sphi 0, %s101
      %s105 = sphi 0, %s104
      %s121 = sphi 0, %s105
    $region4: #{tpu_custom_call.1} parent=1 // loop_header_branch
      %21 = sbr.rel (%p19) target = $region8
    $region5: #{tpu_custom_call.1} parent=1 // loop_body
      %s23 = ssub.s32 %s18, 1
      %s24 = ssub.s32 %s18, 2
      %s25 = sadd.s32 %s18, 1
      %s26 = ssub.s32 %s18, %s25
      %p27 = scmp.eq.s32.totalorder %s26, 0
      %s29 = sadd.s32 %s28, 1
      %s30 = scalar_select %p27, %s28, %s29
      %p33 = pneg %p27
      %p34 = scmp.eq.s32.totalorder %s18, 1
      %p35 = por %p33, %p34
      %p36 = scmp.ne.s32.totalorder %s28, %s31
      %p37 = scmp.eq.s32.totalorder %s18, 0
      %p38 = por %p36, %p37
      %p39 = scmp.ne.s32.totalorder %s28, %s31
      %p40 = scmp.eq.s32.totalorder %s23, 1
      %p41 = por %p39, %p40
      %p42 = scmp.ne.s32.totalorder %s31, %s32
      %p43 = scmp.eq.s32.totalorder %s23, 0
      %p44 = por %p42, %p43
      %p45 = scmp.ne.s32.totalorder %s31, %s32
      %p46 = scmp.eq.s32.totalorder %s24, 1
      %p47 = por %p45, %p46
      %p49 = scmp.ne.s32.totalorder %s32, %s48
      %p50 = scmp.eq.s32.totalorder %s24, 0
      %p51 = por %p49, %p50
      %s52 = ssub.s32 %s18, %s25
      %p53 = scmp.eq.s32.totalorder %s52, 0
      %s55 = sadd.s32 %s54, 1
      %s56 = scalar_select %p53, %s54, %s55
      %p59 = pneg %p53
      %p60 = scmp.eq.s32.totalorder %s18, 1
      %p61 = por %p59, %p60
      %p62 = scmp.ne.s32.totalorder %s54, %s57
      %p63 = scmp.eq.s32.totalorder %s18, 0
      %p64 = por %p62, %p63
      %p65 = scmp.ne.s32.totalorder %s54, %s57
      %p66 = scmp.eq.s32.totalorder %s23, 1
      %p67 = por %p65, %p66
      %p68 = scmp.ne.s32.totalorder %s57, %s58
      %p69 = scmp.eq.s32.totalorder %s23, 0
      %p70 = por %p68, %p69
      %p71 = scmp.ne.s32.totalorder %s57, %s58
      %p72 = scmp.eq.s32.totalorder %s24, 1
      %p73 = por %p71, %p72
      %p75 = scmp.ne.s32.totalorder %s58, %s74
      %p76 = scmp.eq.s32.totalorder %s24, 0
      %p77 = por %p75, %p76
      %s79 = sadd.s32 %s78, 1
      %p82 = scmp.eq.s32.totalorder %s18, 1
      %p83 = scmp.ne.s32.totalorder %s78, %s80
      %p84 = scmp.eq.s32.totalorder %s18, 0
      %p85 = por %p83, %p84
      %p86 = scmp.ne.s32.totalorder %s78, %s80
      %p87 = scmp.eq.s32.totalorder %s23, 1
      %p88 = por %p86, %p87
      %p89 = scmp.ne.s32.totalorder %s80, %s81
      %p90 = scmp.eq.s32.totalorder %s23, 0
      %p91 = por %p89, %p90
      %p92 = scmp.ne.s32.totalorder %s80, %s81
      %p93 = scmp.eq.s32.totalorder %s24, 1
      %p94 = por %p92, %p93
      %p96 = scmp.ne.s32.totalorder %s81, %s95
      %p97 = scmp.eq.s32.totalorder %s24, 0
      %p98 = por %p96, %p97
      %s99 = ssub.s32 %s18, %s25
      %p100 = scmp.eq.s32.totalorder %s99, 0
      %s102 = sadd.s32 %s101, 1
      %s103 = scalar_select %p100, %s101, %s102
      %p106 = pneg %p100
      %p107 = scmp.eq.s32.totalorder %s18, 1
      %p108 = por %p106, %p107
      %p109 = scmp.ne.s32.totalorder %s101, %s104
      %p110 = scmp.eq.s32.totalorder %s18, 0
      %p111 = por %p109, %p110
      %p112 = scmp.ne.s32.totalorder %s101, %s104
      %p113 = scmp.eq.s32.totalorder %s23, 1
      %p114 = por %p112, %p113
      %p115 = scmp.ne.s32.totalorder %s104, %s105
      %p116 = scmp.eq.s32.totalorder %s23, 0
      %p117 = por %p115, %p116
      %p118 = scmp.ne.s32.totalorder %s104, %s105
      %p119 = scmp.eq.s32.totalorder %s24, 1
      %p120 = por %p118, %p119
      %p122 = scmp.ne.s32.totalorder %s105, %s121
      %p123 = scmp.eq.s32.totalorder %s24, 0
      %p124 = por %p122, %p123
      %p125 = scmp.le.s32.totalorder 1, %s18
      %p126 = scmp.lt.s32.totalorder %s18, 3
      %p127 = pnand %p125, %p126
      %p128 = pneg %p127
      // Predicated region
      $region9: #{tpu_custom_call.1} parent=5 // pred_check
        _
      $region10: #{tpu_custom_call.1} parent=5 // pred_check_branch
        %130 = sbr.rel (%p127) target = $region12
      $region11: #{tpu_custom_call.1} parent=5 // pred_region
        %s131 = ssub.s32 %s18, 1
        // Predicated region
        $region13: #{tpu_custom_call.1} parent=11 // pred_check
          %p132 = pneg %p91
        $region14: #{tpu_custom_call.1} parent=11 // pred_check_branch
          %134 = sbr.rel (%p132) target = $region16
        $region15: #{tpu_custom_call.1} parent=11 // pred_region
          %136 = vsyncadd [#allocation6], 0
          %s137 = sshll.u32 %s2, 4
          %s138 = int_to_ptr.hbm [resolvable:$true] %s137
          %s139 = sshll.u32 [#allocation7], 4
          %s140 = int_to_ptr.vmem [resolvable:$true] %s139
          %145 = dma.hbm_to_vmem [thread:$0]  %s138, 36864, %s140, [#allocation6], 384, 384, 24
        $region16: #{tpu_custom_call.1} parent=11 // pred_fallthru
          _
      $region12: #{tpu_custom_call.1} parent=5 // pred_fallthru
        _
      %p146 = scmp.lt.s32.totalorder %s18, 2
      // Predicated region
      $region17: #{tpu_custom_call.1} parent=5 // pred_check
        %p147 = pneg %p146
      $region18: #{tpu_custom_call.1} parent=5 // pred_check_branch
        %149 = sbr.rel (%p147) target = $region20
      $region19: #{tpu_custom_call.1} parent=5 // pred_region
        // Predicated region
        $region21: #{tpu_custom_call.1} parent=19 // pred_check
          %p150 = pneg %p38
        $region22: #{tpu_custom_call.1} parent=19 // pred_check_branch
          %152 = sbr.rel (%p150) target = $region24
        $region23: #{tpu_custom_call.1} parent=19 // pred_region
          %s153 = sand.u32 %s28, 1
          %s154 = scalar_lea.sflag [#allocation3], %s153
          %s155 = sand.u32 %s28, 1
          %s156 = smul.addr %s155, 24
          %s157 = scalar_lea.vmem [#allocation2], %s156
          %159 = vsyncadd %s154, 0
          %s160 = smul.addr %s18, 6
          %s161 = smul.addr %s160, 4
          %s162 = scalar_lea.hbm %s0, %s161
          %s164 = sshll.u32 %s162, 4
          %s165 = int_to_ptr.hbm [resolvable:$true] %s164
          %s166 = sshll.u32 %s157, 4
          %s167 = int_to_ptr.vmem [resolvable:$true] %s166
          %169 = dma.hbm_to_vmem [thread:$0]  %s165, 384, %s167, %s154
        $region24: #{tpu_custom_call.1} parent=19 // pred_fallthru
          _
        // Predicated region
        $region25: #{tpu_custom_call.1} parent=19 // pred_check
          %p170 = pneg %p64
        $region26: #{tpu_custom_call.1} parent=19 // pred_check_branch
          %172 = sbr.rel (%p170) target = $region28
        $region27: #{tpu_custom_call.1} parent=19 // pred_region
          %s173 = sand.u32 %s18, 1
          %s174 = scalar_lea.sflag [#allocation6], %s173
          %s175 = sand.u32 %s54, 1
          %s176 = smul.addr %s175, 24
          %s177 = scalar_lea.vmem [#allocation5], %s176
          %179 = vsyncadd %s174, 0
          %s180 = smul.addr %s18, 6
          %s181 = smul.addr %s180, 4
          %s182 = scalar_lea.hbm %s1, %s181
          %s184 = sshll.u32 %s182, 4
          %s185 = int_to_ptr.hbm [resolvable:$true] %s184
          %s186 = sshll.u32 %s177, 4
          %s187 = int_to_ptr.vmem [resolvable:$true] %s186
          %189 = dma.hbm_to_vmem [thread:$0]  %s185, 384, %s187, %s174
        $region28: #{tpu_custom_call.1} parent=19 // pred_fallthru
          _
      $region20: #{tpu_custom_call.1} parent=5 // pred_fallthru
        _
      %p190 = scmp.le.s32.totalorder 1, %s18
      %p191 = scmp.lt.s32.totalorder %s18, 3
      %p192 = pnand %p190, %p191
      %p193 = pneg %p192
      // Predicated region
      $region29: #{tpu_custom_call.1} parent=5 // pred_check
        _
      $region30: #{tpu_custom_call.1} parent=5 // pred_check_branch
        %195 = sbr.rel (%p192) target = $region32
      $region31: #{tpu_custom_call.1} parent=5 // pred_region
        %s196 = ssub.s32 %s18, 1
        %s197 = sand.u32 %s31, 1
        %s198 = scalar_lea.sflag [#allocation3], %s197
        %s199 = sand.u32 %s31, 1
        %s200 = smul.addr %s199, 24
        %s201 = scalar_lea.vmem [#allocation2], %s200
        // Predicated region
        $region33: #{tpu_custom_call.1} parent=31 // pred_check
          %p202 = pneg %p44
        $region34: #{tpu_custom_call.1} parent=31 // pred_check_branch
          %204 = sbr.rel (%p202) target = $region36
        $region35: #{tpu_custom_call.1} parent=31 // pred_region
          %206 = dma.done %s198, 384
        $region36: #{tpu_custom_call.1} parent=31 // pred_fallthru
          _
        %s207 = sand.u32 %s23, 1
        %s208 = scalar_lea.sflag [#allocation6], %s207
        %s209 = sand.u32 %s57, 1
        %s210 = smul.addr %s209, 24
        %s211 = scalar_lea.vmem [#allocation5], %s210
        // Predicated region
        $region37: #{tpu_custom_call.1} parent=31 // pred_check
          %p212 = pneg %p70
        $region38: #{tpu_custom_call.1} parent=31 // pred_check_branch
          %214 = sbr.rel (%p212) target = $region40
        $region39: #{tpu_custom_call.1} parent=31 // pred_region
          %216 = dma.done %s208, 384
        $region40: #{tpu_custom_call.1} parent=31 // pred_fallthru
          _
        // Predicated region
        $region41: #{tpu_custom_call.1} parent=31 // pred_check
          %p217 = pneg %p91
        $region42: #{tpu_custom_call.1} parent=31 // pred_check_branch
          %219 = sbr.rel (%p217) target = $region44
        $region43: #{tpu_custom_call.1} parent=31 // pred_region
          %221 = dma.done [#allocation6], 36864
        $region44: #{tpu_custom_call.1} parent=31 // pred_fallthru
          _
        %s222 = sand.u32 %s31, 1
        %s223 = scalar_lea.sflag [#allocation3], %s222
        %s224 = sand.u32 %s31, 1
        %s225 = smul.addr %s224, 24
        %s226 = scalar_lea.vmem [#allocation2], %s225
        %p227 = pneg %p44
        %p228 = pneg %p41
        %s229 = sand.u32 %s23, 1
        %s230 = scalar_lea.sflag [#allocation6], %s229
        %s231 = sand.u32 %s57, 1
        %s232 = smul.addr %s231, 24
        %s233 = scalar_lea.vmem [#allocation5], %s232
        %p234 = pneg %p70
        %p235 = pneg %p67
        %p236 = pneg %p91
        %p237 = pneg %p88
        %p238 = pneg %p117
        %p239 = pneg %p114
        %s240 = sand.u32 %s104, 1
        %s241 = scalar_lea.sflag [#allocation4], %s240
        %s242 = sand.u32 %s104, 1
        %s243 = smul.addr %s242, 6
        %s244 = scalar_lea.vmem [#allocation8], %s243
        %v246 = vld [vmem:[%s201] sm:$0xff]
        %v247 = vld [vmem:[%s201 + $0x8] sm:$0xff]
        %v248 = vld [vmem:[%s201 + $0x10] sm:$0xff]
        %v249 = vld [vmem:[#allocation7] sm:$0xff]
        %v250 = vld [vmem:[#allocation7 + $0x8] sm:$0xff]
        %v251 = vld [vmem:[#allocation7 + $0x10] sm:$0xff]
        %v252 = vld [vmem:[#allocation7 + $0x18] sm:$0xff]
        %v253 = vld [vmem:[#allocation7 + $0x20] sm:$0xff]
        %v254 = vld [vmem:[#allocation7 + $0x28] sm:$0xff]
        %v255 = vld [vmem:[#allocation7 + $0x30] sm:$0xff]
        %v256 = vld [vmem:[#allocation7 + $0x38] sm:$0xff]
        %v257 = vld [vmem:[#allocation7 + $0x40] sm:$0xff]
        %v258 = vld [vmem:[#allocation7 + $0x48] sm:$0xff]
        %v259 = vld [vmem:[#allocation7 + $0x50] sm:$0xff]
        %v260 = vld [vmem:[#allocation7 + $0x58] sm:$0xff]
        %v261 = vld [vmem:[#allocation7 + $0x60] sm:$0xff]
        %v262 = vld [vmem:[#allocation7 + $0x68] sm:$0xff]
        %v263 = vld [vmem:[#allocation7 + $0x70] sm:$0xff]
        %v264 = vld [vmem:[#allocation7 + $0x78] sm:$0xff]
        %v265 = vld [vmem:[#allocation7 + $0x80] sm:$0xff]
        %v266 = vld [vmem:[#allocation7 + $0x88] sm:$0xff]
        %v267 = vld [vmem:[#allocation7 + $0x90] sm:$0xff]
        %v268 = vld [vmem:[#allocation7 + $0x98] sm:$0xff]
        %v269 = vld [vmem:[#allocation7 + $0xa0] sm:$0xff]
        %v270 = vld [vmem:[#allocation7 + $0xa8] sm:$0xff]
        %v271 = vld [vmem:[#allocation7 + $0xb0] sm:$0xff]
        %v272 = vld [vmem:[#allocation7 + $0xb8] sm:$0xff]
        %v273 = vld [vmem:[#allocation7 + $0xc0] sm:$0xff]
        %v274 = vld [vmem:[#allocation7 + $0xc8] sm:$0xff]
        %v275 = vld [vmem:[#allocation7 + $0xd0] sm:$0xff]
        %v276 = vld [vmem:[#allocation7 + $0xd8] sm:$0xff]
        %v277 = vld [vmem:[#allocation7 + $0xe0] sm:$0xff]
        %v278 = vld [vmem:[#allocation7 + $0xe8] sm:$0xff]
        %v279 = vld [vmem:[#allocation7 + $0xf0] sm:$0xff]
        %v280 = vld [vmem:[#allocation7 + $0xf8] sm:$0xff]
        %v281 = vld [vmem:[#allocation7 + $0x100] sm:$0xff]
        %v282 = vld [vmem:[#allocation7 + $0x108] sm:$0xff]
        %v283 = vld [vmem:[#allocation7 + $0x110] sm:$0xff]
        %v284 = vld [vmem:[#allocation7 + $0x118] sm:$0xff]
        %v285 = vld [vmem:[#allocation7 + $0x120] sm:$0xff]
        %v286 = vld [vmem:[#allocation7 + $0x128] sm:$0xff]
        %v287 = vld [vmem:[#allocation7 + $0x130] sm:$0xff]
        %v288 = vld [vmem:[#allocation7 + $0x138] sm:$0xff]
        %v289 = vld [vmem:[#allocation7 + $0x140] sm:$0xff]
        %v290 = vld [vmem:[#allocation7 + $0x148] sm:$0xff]
        %v291 = vld [vmem:[#allocation7 + $0x150] sm:$0xff]
        %v292 = vld [vmem:[#allocation7 + $0x158] sm:$0xff]
        %v293 = vld [vmem:[#allocation7 + $0x160] sm:$0xff]
        %v294 = vld [vmem:[#allocation7 + $0x168] sm:$0xff]
        %v295 = vld [vmem:[#allocation7 + $0x170] sm:$0xff]
        %v296 = vld [vmem:[#allocation7 + $0x178] sm:$0xff]
        %v297 = vld [vmem:[#allocation7 + $0x180] sm:$0xff]
        %v298 = vld [vmem:[#allocation7 + $0x188] sm:$0xff]
        %v299 = vld [vmem:[#allocation7 + $0x190] sm:$0xff]
        %v300 = vld [vmem:[#allocation7 + $0x198] sm:$0xff]
        %v301 = vld [vmem:[#allocation7 + $0x1a0] sm:$0xff]
        %v302 = vld [vmem:[#allocation7 + $0x1a8] sm:$0xff]
        %v303 = vld [vmem:[#allocation7 + $0x1b0] sm:$0xff]
        %v304 = vld [vmem:[#allocation7 + $0x1b8] sm:$0xff]
        %v305 = vld [vmem:[#allocation7 + $0x1c0] sm:$0xff]
        %v306 = vld [vmem:[#allocation7 + $0x1c8] sm:$0xff]
        %v307 = vld [vmem:[#allocation7 + $0x1d0] sm:$0xff]
        %v308 = vld [vmem:[#allocation7 + $0x1d8] sm:$0xff]
        %v309 = vld [vmem:[#allocation7 + $0x1e0] sm:$0xff]
        %v310 = vld [vmem:[#allocation7 + $0x1e8] sm:$0xff]
        %v311 = vld [vmem:[#allocation7 + $0x1f0] sm:$0xff]
        %v312 = vld [vmem:[#allocation7 + $0x1f8] sm:$0xff]
        %v313 = vld [vmem:[#allocation7 + $0x200] sm:$0xff]
        %v314 = vld [vmem:[#allocation7 + $0x208] sm:$0xff]
        %v315 = vld [vmem:[#allocation7 + $0x210] sm:$0xff]
        %v316 = vld [vmem:[#allocation7 + $0x218] sm:$0xff]
        %v317 = vld [vmem:[#allocation7 + $0x220] sm:$0xff]
        %v318 = vld [vmem:[#allocation7 + $0x228] sm:$0xff]
        %v319 = vld [vmem:[#allocation7 + $0x230] sm:$0xff]
        %v320 = vld [vmem:[#allocation7 + $0x238] sm:$0xff]
        %v321 = vld [vmem:[#allocation7 + $0x240] sm:$0xff]
        %v322 = vld [vmem:[#allocation7 + $0x248] sm:$0xff]
        %v323 = vld [vmem:[#allocation7 + $0x250] sm:$0xff]
        %v324 = vld [vmem:[#allocation7 + $0x258] sm:$0xff]
        %v325 = vld [vmem:[#allocation7 + $0x260] sm:$0xff]
        %v326 = vld [vmem:[#allocation7 + $0x268] sm:$0xff]
        %v327 = vld [vmem:[#allocation7 + $0x270] sm:$0xff]
        %v328 = vld [vmem:[#allocation7 + $0x278] sm:$0xff]
        %v329 = vld [vmem:[#allocation7 + $0x280] sm:$0xff]
        %v330 = vld [vmem:[#allocation7 + $0x288] sm:$0xff]
        %v331 = vld [vmem:[#allocation7 + $0x290] sm:$0xff]
        %v332 = vld [vmem:[#allocation7 + $0x298] sm:$0xff]
        %v333 = vld [vmem:[#allocation7 + $0x2a0] sm:$0xff]
        %v334 = vld [vmem:[#allocation7 + $0x2a8] sm:$0xff]
        %v335 = vld [vmem:[#allocation7 + $0x2b0] sm:$0xff]
        %v336 = vld [vmem:[#allocation7 + $0x2b8] sm:$0xff]
        %v337 = vld [vmem:[#allocation7 + $0x2c0] sm:$0xff]
        %v338 = vld [vmem:[#allocation7 + $0x2c8] sm:$0xff]
        %v339 = vld [vmem:[#allocation7 + $0x2d0] sm:$0xff]
        %v340 = vld [vmem:[#allocation7 + $0x2d8] sm:$0xff]
        %v341 = vld [vmem:[#allocation7 + $0x2e0] sm:$0xff]
        %v342 = vld [vmem:[#allocation7 + $0x2e8] sm:$0xff]
        %v343 = vld [vmem:[#allocation7 + $0x2f0] sm:$0xff]
        %v344 = vld [vmem:[#allocation7 + $0x2f8] sm:$0xff]
        %v345 = vld [vmem:[#allocation7 + $0x300] sm:$0xff]
        %v346 = vld [vmem:[#allocation7 + $0x308] sm:$0xff]
        %v347 = vld [vmem:[#allocation7 + $0x310] sm:$0xff]
        %v348 = vld [vmem:[#allocation7 + $0x318] sm:$0xff]
        %v349 = vld [vmem:[#allocation7 + $0x320] sm:$0xff]
        %v350 = vld [vmem:[#allocation7 + $0x328] sm:$0xff]
        %v351 = vld [vmem:[#allocation7 + $0x330] sm:$0xff]
        %v352 = vld [vmem:[#allocation7 + $0x338] sm:$0xff]
        %v353 = vld [vmem:[#allocation7 + $0x340] sm:$0xff]
        %v354 = vld [vmem:[#allocation7 + $0x348] sm:$0xff]
        %v355 = vld [vmem:[#allocation7 + $0x350] sm:$0xff]
        %v356 = vld [vmem:[#allocation7 + $0x358] sm:$0xff]
        %v357 = vld [vmem:[#allocation7 + $0x360] sm:$0xff]
        %v358 = vld [vmem:[#allocation7 + $0x368] sm:$0xff]
        %v359 = vld [vmem:[#allocation7 + $0x370] sm:$0xff]
        %v360 = vld [vmem:[#allocation7 + $0x378] sm:$0xff]
        %v361 = vld [vmem:[#allocation7 + $0x380] sm:$0xff]
        %v362 = vld [vmem:[#allocation7 + $0x388] sm:$0xff]
        %v363 = vld [vmem:[#allocation7 + $0x390] sm:$0xff]
        %v364 = vld [vmem:[#allocation7 + $0x398] sm:$0xff]
        %v365 = vld [vmem:[#allocation7 + $0x3a0] sm:$0xff]
        %v366 = vld [vmem:[#allocation7 + $0x3a8] sm:$0xff]
        %v367 = vld [vmem:[#allocation7 + $0x3b0] sm:$0xff]
        %v368 = vld [vmem:[#allocation7 + $0x3b8] sm:$0xff]
        %v369 = vld [vmem:[#allocation7 + $0x3c0] sm:$0xff]
        %v370 = vld [vmem:[#allocation7 + $0x3c8] sm:$0xff]
        %v371 = vld [vmem:[#allocation7 + $0x3d0] sm:$0xff]
        %v372 = vld [vmem:[#allocation7 + $0x3d8] sm:$0xff]
        %v373 = vld [vmem:[#allocation7 + $0x3e0] sm:$0xff]
        %v374 = vld [vmem:[#allocation7 + $0x3e8] sm:$0xff]
        %v375 = vld [vmem:[#allocation7 + $0x3f0] sm:$0xff]
        %v376 = vld [vmem:[#allocation7 + $0x3f8] sm:$0xff]
        %v377 = vld [vmem:[#allocation7 + $0x400] sm:$0xff]
        %v378 = vld [vmem:[#allocation7 + $0x408] sm:$0xff]
        %v379 = vld [vmem:[#allocation7 + $0x410] sm:$0xff]
        %v380 = vld [vmem:[#allocation7 + $0x418] sm:$0xff]
        %v381 = vld [vmem:[#allocation7 + $0x420] sm:$0xff]
        %v382 = vld [vmem:[#allocation7 + $0x428] sm:$0xff]
        %v383 = vld [vmem:[#allocation7 + $0x430] sm:$0xff]
        %v384 = vld [vmem:[#allocation7 + $0x438] sm:$0xff]
        %v385 = vld [vmem:[#allocation7 + $0x440] sm:$0xff]
        %v386 = vld [vmem:[#allocation7 + $0x448] sm:$0xff]
        %v387 = vld [vmem:[#allocation7 + $0x450] sm:$0xff]
        %v388 = vld [vmem:[#allocation7 + $0x458] sm:$0xff]
        %v389 = vld [vmem:[#allocation7 + $0x460] sm:$0xff]
        %v390 = vld [vmem:[#allocation7 + $0x468] sm:$0xff]
        %v391 = vld [vmem:[#allocation7 + $0x470] sm:$0xff]
        %v392 = vld [vmem:[#allocation7 + $0x478] sm:$0xff]
        %v393 = vld [vmem:[#allocation7 + $0x480] sm:$0xff]
        %v394 = vld [vmem:[#allocation7 + $0x488] sm:$0xff]
        %v395 = vld [vmem:[#allocation7 + $0x490] sm:$0xff]
        %v396 = vld [vmem:[#allocation7 + $0x498] sm:$0xff]
        %v397 = vld [vmem:[#allocation7 + $0x4a0] sm:$0xff]
        %v398 = vld [vmem:[#allocation7 + $0x4a8] sm:$0xff]
        %v399 = vld [vmem:[#allocation7 + $0x4b0] sm:$0xff]
        %v400 = vld [vmem:[#allocation7 + $0x4b8] sm:$0xff]
        %v401 = vld [vmem:[#allocation7 + $0x4c0] sm:$0xff]
        %v402 = vld [vmem:[#allocation7 + $0x4c8] sm:$0xff]
        %v403 = vld [vmem:[#allocation7 + $0x4d0] sm:$0xff]
        %v404 = vld [vmem:[#allocation7 + $0x4d8] sm:$0xff]
        %v405 = vld [vmem:[#allocation7 + $0x4e0] sm:$0xff]
        %v406 = vld [vmem:[#allocation7 + $0x4e8] sm:$0xff]
        %v407 = vld [vmem:[#allocation7 + $0x4f0] sm:$0xff]
        %v408 = vld [vmem:[#allocation7 + $0x4f8] sm:$0xff]
        %v409 = vld [vmem:[#allocation7 + $0x500] sm:$0xff]
        %v410 = vld [vmem:[#allocation7 + $0x508] sm:$0xff]
        %v411 = vld [vmem:[#allocation7 + $0x510] sm:$0xff]
        %v412 = vld [vmem:[#allocation7 + $0x518] sm:$0xff]
        %v413 = vld [vmem:[#allocation7 + $0x520] sm:$0xff]
        %v414 = vld [vmem:[#allocation7 + $0x528] sm:$0xff]
        %v415 = vld [vmem:[#allocation7 + $0x530] sm:$0xff]
        %v416 = vld [vmem:[#allocation7 + $0x538] sm:$0xff]
        %v417 = vld [vmem:[#allocation7 + $0x540] sm:$0xff]
        %v418 = vld [vmem:[#allocation7 + $0x548] sm:$0xff]
        %v419 = vld [vmem:[#allocation7 + $0x550] sm:$0xff]
        %v420 = vld [vmem:[#allocation7 + $0x558] sm:$0xff]
        %v421 = vld [vmem:[#allocation7 + $0x560] sm:$0xff]
        %v422 = vld [vmem:[#allocation7 + $0x568] sm:$0xff]
        %v423 = vld [vmem:[#allocation7 + $0x570] sm:$0xff]
        %v424 = vld [vmem:[#allocation7 + $0x578] sm:$0xff]
        %v425 = vld [vmem:[#allocation7 + $0x580] sm:$0xff]
        %v426 = vld [vmem:[#allocation7 + $0x588] sm:$0xff]
        %v427 = vld [vmem:[#allocation7 + $0x590] sm:$0xff]
        %v428 = vld [vmem:[#allocation7 + $0x598] sm:$0xff]
        %v429 = vld [vmem:[#allocation7 + $0x5a0] sm:$0xff]
        %v430 = vld [vmem:[#allocation7 + $0x5a8] sm:$0xff]
        %v431 = vld [vmem:[#allocation7 + $0x5b0] sm:$0xff]
        %v432 = vld [vmem:[#allocation7 + $0x5b8] sm:$0xff]
        %v433 = vld [vmem:[#allocation7 + $0x5c0] sm:$0xff]
        %v434 = vld [vmem:[#allocation7 + $0x5c8] sm:$0xff]
        %v435 = vld [vmem:[#allocation7 + $0x5d0] sm:$0xff]
        %v436 = vld [vmem:[#allocation7 + $0x5d8] sm:$0xff]
        %v437 = vld [vmem:[#allocation7 + $0x5e0] sm:$0xff]
        %v438 = vld [vmem:[#allocation7 + $0x5e8] sm:$0xff]
        %v439 = vld [vmem:[#allocation7 + $0x5f0] sm:$0xff]
        %v440 = vld [vmem:[#allocation7 + $0x5f8] sm:$0xff]
        %v441 = vld [vmem:[#allocation7 + $0x600] sm:$0xff]
        %v442 = vld [vmem:[#allocation7 + $0x608] sm:$0xff]
        %v443 = vld [vmem:[#allocation7 + $0x610] sm:$0xff]
        %v444 = vld [vmem:[#allocation7 + $0x618] sm:$0xff]
        %v445 = vld [vmem:[#allocation7 + $0x620] sm:$0xff]
        %v446 = vld [vmem:[#allocation7 + $0x628] sm:$0xff]
        %v447 = vld [vmem:[#allocation7 + $0x630] sm:$0xff]
        %v448 = vld [vmem:[#allocation7 + $0x638] sm:$0xff]
        %v449 = vld [vmem:[#allocation7 + $0x640] sm:$0xff]
        %v450 = vld [vmem:[#allocation7 + $0x648] sm:$0xff]
        %v451 = vld [vmem:[#allocation7 + $0x650] sm:$0xff]
        %v452 = vld [vmem:[#allocation7 + $0x658] sm:$0xff]
        %v453 = vld [vmem:[#allocation7 + $0x660] sm:$0xff]
        %v454 = vld [vmem:[#allocation7 + $0x668] sm:$0xff]
        %v455 = vld [vmem:[#allocation7 + $0x670] sm:$0xff]
        %v456 = vld [vmem:[#allocation7 + $0x678] sm:$0xff]
        %v457 = vld [vmem:[#allocation7 + $0x680] sm:$0xff]
        %v458 = vld [vmem:[#allocation7 + $0x688] sm:$0xff]
        %v459 = vld [vmem:[#allocation7 + $0x690] sm:$0xff]
        %v460 = vld [vmem:[#allocation7 + $0x698] sm:$0xff]
        %v461 = vld [vmem:[#allocation7 + $0x6a0] sm:$0xff]
        %v462 = vld [vmem:[#allocation7 + $0x6a8] sm:$0xff]
        %v463 = vld [vmem:[#allocation7 + $0x6b0] sm:$0xff]
        %v464 = vld [vmem:[#allocation7 + $0x6b8] sm:$0xff]
        %v465 = vld [vmem:[#allocation7 + $0x6c0] sm:$0xff]
        %v466 = vld [vmem:[#allocation7 + $0x6c8] sm:$0xff]
        %v467 = vld [vmem:[#allocation7 + $0x6d0] sm:$0xff]
        %v468 = vld [vmem:[#allocation7 + $0x6d8] sm:$0xff]
        %v469 = vld [vmem:[#allocation7 + $0x6e0] sm:$0xff]
        %v470 = vld [vmem:[#allocation7 + $0x6e8] sm:$0xff]
        %v471 = vld [vmem:[#allocation7 + $0x6f0] sm:$0xff]
        %v472 = vld [vmem:[#allocation7 + $0x6f8] sm:$0xff]
        %v473 = vld [vmem:[#allocation7 + $0x700] sm:$0xff]
        %v474 = vld [vmem:[#allocation7 + $0x708] sm:$0xff]
        %v475 = vld [vmem:[#allocation7 + $0x710] sm:$0xff]
        %v476 = vld [vmem:[#allocation7 + $0x718] sm:$0xff]
        %v477 = vld [vmem:[#allocation7 + $0x720] sm:$0xff]
        %v478 = vld [vmem:[#allocation7 + $0x728] sm:$0xff]
        %v479 = vld [vmem:[#allocation7 + $0x730] sm:$0xff]
        %v480 = vld [vmem:[#allocation7 + $0x738] sm:$0xff]
        %v481 = vld [vmem:[#allocation7 + $0x740] sm:$0xff]
        %v482 = vld [vmem:[#allocation7 + $0x748] sm:$0xff]
        %v483 = vld [vmem:[#allocation7 + $0x750] sm:$0xff]
        %v484 = vld [vmem:[#allocation7 + $0x758] sm:$0xff]
        %v485 = vld [vmem:[#allocation7 + $0x760] sm:$0xff]
        %v486 = vld [vmem:[#allocation7 + $0x768] sm:$0xff]
        %v487 = vld [vmem:[#allocation7 + $0x770] sm:$0xff]
        %v488 = vld [vmem:[#allocation7 + $0x778] sm:$0xff]
        %v489 = vld [vmem:[#allocation7 + $0x780] sm:$0xff]
        %v490 = vld [vmem:[#allocation7 + $0x788] sm:$0xff]
        %v491 = vld [vmem:[#allocation7 + $0x790] sm:$0xff]
        %v492 = vld [vmem:[#allocation7 + $0x798] sm:$0xff]
        %v493 = vld [vmem:[#allocation7 + $0x7a0] sm:$0xff]
        %v494 = vld [vmem:[#allocation7 + $0x7a8] sm:$0xff]
        %v495 = vld [vmem:[#allocation7 + $0x7b0] sm:$0xff]
        %v496 = vld [vmem:[#allocation7 + $0x7b8] sm:$0xff]
        %v497 = vld [vmem:[#allocation7 + $0x7c0] sm:$0xff]
        %v498 = vld [vmem:[#allocation7 + $0x7c8] sm:$0xff]
        %v499 = vld [vmem:[#allocation7 + $0x7d0] sm:$0xff]
        %v500 = vld [vmem:[#allocation7 + $0x7d8] sm:$0xff]
        %v501 = vld [vmem:[#allocation7 + $0x7e0] sm:$0xff]
        %v502 = vld [vmem:[#allocation7 + $0x7e8] sm:$0xff]
        %v503 = vld [vmem:[#allocation7 + $0x7f0] sm:$0xff]
        %v504 = vld [vmem:[#allocation7 + $0x7f8] sm:$0xff]
        %v505 = vld [vmem:[#allocation7 + $0x800] sm:$0xff]
        %v506 = vld [vmem:[#allocation7 + $0x808] sm:$0xff]
        %v507 = vld [vmem:[#allocation7 + $0x810] sm:$0xff]
        %v508 = vld [vmem:[#allocation7 + $0x818] sm:$0xff]
        %v509 = vld [vmem:[#allocation7 + $0x820] sm:$0xff]
        %v510 = vld [vmem:[#allocation7 + $0x828] sm:$0xff]
        %v511 = vld [vmem:[#allocation7 + $0x830] sm:$0xff]
        %v512 = vld [vmem:[#allocation7 + $0x838] sm:$0xff]
        %v513 = vld [vmem:[#allocation7 + $0x840] sm:$0xff]
        %v514 = vld [vmem:[#allocation7 + $0x848] sm:$0xff]
        %v515 = vld [vmem:[#allocation7 + $0x850] sm:$0xff]
        %v516 = vld [vmem:[#allocation7 + $0x858] sm:$0xff]
        %v517 = vld [vmem:[#allocation7 + $0x860] sm:$0xff]
        %v518 = vld [vmem:[#allocation7 + $0x868] sm:$0xff]
        %v519 = vld [vmem:[#allocation7 + $0x870] sm:$0xff]
        %v520 = vld [vmem:[#allocation7 + $0x878] sm:$0xff]
        %v521 = vld [vmem:[#allocation7 + $0x880] sm:$0xff]
        %v522 = vld [vmem:[#allocation7 + $0x888] sm:$0xff]
        %v523 = vld [vmem:[#allocation7 + $0x890] sm:$0xff]
        %v524 = vld [vmem:[#allocation7 + $0x898] sm:$0xff]
        %v525 = vld [vmem:[#allocation7 + $0x8a0] sm:$0xff]
        %v526 = vld [vmem:[#allocation7 + $0x8a8] sm:$0xff]
        %v527 = vld [vmem:[#allocation7 + $0x8b0] sm:$0xff]
        %v528 = vld [vmem:[#allocation7 + $0x8b8] sm:$0xff]
        %v529 = vld [vmem:[#allocation7 + $0x8c0] sm:$0xff]
        %v530 = vld [vmem:[#allocation7 + $0x8c8] sm:$0xff]
        %v531 = vld [vmem:[#allocation7 + $0x8d0] sm:$0xff]
        %v532 = vld [vmem:[#allocation7 + $0x8d8] sm:$0xff]
        %v533 = vld [vmem:[#allocation7 + $0x8e0] sm:$0xff]
        %v534 = vld [vmem:[#allocation7 + $0x8e8] sm:$0xff]
        %v535 = vld [vmem:[#allocation7 + $0x8f0] sm:$0xff]
        %v536 = vld [vmem:[#allocation7 + $0x8f8] sm:$0xff]
        %v540 = vunpack.c.l.b16 %v246
        %v541 = vunpack.c.h.b16 %v246
        %v542 = vunpack.c.l.b16 %v247
        %v543 = vunpack.c.h.b16 %v247
        %v544 = vunpack.c.l.b16 %v248
        %v545 = vunpack.c.h.b16 %v248
        %v546 = vpack.c.b16 %v540, %v540
        %v547 = vpack.c.b16 %v541, %v541
        %v548 = vpack.c.b16 %v542, %v542
        %v549 = vpack.c.b16 %v543, %v543
        %v550 = vpack.c.b16 %v544, %v544
        %v551 = vpack.c.b16 %v545, %v545
        %v846 = vunpack.c.l.b16 %v249
        %v847 = vunpack.c.h.b16 %v249
        %v848 = vunpack.c.l.b16 %v250
        %v849 = vunpack.c.h.b16 %v250
        %v850 = vunpack.c.l.b16 %v251
        %v851 = vunpack.c.h.b16 %v251
        %v852 = vunpack.c.l.b16 %v252
        %v853 = vunpack.c.h.b16 %v252
        %v854 = vunpack.c.l.b16 %v253
        %v855 = vunpack.c.h.b16 %v253
        %v856 = vunpack.c.l.b16 %v254
        %v857 = vunpack.c.h.b16 %v254
        %v858 = vunpack.c.l.b16 %v255
        %v859 = vunpack.c.h.b16 %v255
        %v860 = vunpack.c.l.b16 %v256
        %v861 = vunpack.c.h.b16 %v256
        %v862 = vunpack.c.l.b16 %v257
        %v863 = vunpack.c.h.b16 %v257
        %v864 = vunpack.c.l.b16 %v258
        %v865 = vunpack.c.h.b16 %v258
        %v866 = vunpack.c.l.b16 %v259
        %v867 = vunpack.c.h.b16 %v259
        %v868 = vunpack.c.l.b16 %v260
        %v869 = vunpack.c.h.b16 %v260
        %v870 = vunpack.c.l.b16 %v261
        %v871 = vunpack.c.h.b16 %v261
        %v872 = vunpack.c.l.b16 %v262
        %v873 = vunpack.c.h.b16 %v262
        %v874 = vunpack.c.l.b16 %v263
        %v875 = vunpack.c.h.b16 %v263
        %v876 = vunpack.c.l.b16 %v264
        %v877 = vunpack.c.h.b16 %v264
        %v878 = vunpack.c.l.b16 %v265
        %v879 = vunpack.c.h.b16 %v265
        %v880 = vunpack.c.l.b16 %v266
        %v881 = vunpack.c.h.b16 %v266
        %v882 = vunpack.c.l.b16 %v267
        %v883 = vunpack.c.h.b16 %v267
        %v884 = vunpack.c.l.b16 %v268
        %v885 = vunpack.c.h.b16 %v268
        %v886 = vunpack.c.l.b16 %v269
        %v887 = vunpack.c.h.b16 %v269
        %v888 = vunpack.c.l.b16 %v270
        %v889 = vunpack.c.h.b16 %v270
        %v890 = vunpack.c.l.b16 %v271
        %v891 = vunpack.c.h.b16 %v271
        %v892 = vunpack.c.l.b16 %v272
        %v893 = vunpack.c.h.b16 %v272
        %v894 = vunpack.c.l.b16 %v273
        %v895 = vunpack.c.h.b16 %v273
        %v896 = vunpack.c.l.b16 %v274
        %v897 = vunpack.c.h.b16 %v274
        %v898 = vunpack.c.l.b16 %v275
        %v899 = vunpack.c.h.b16 %v275
        %v900 = vunpack.c.l.b16 %v276
        %v901 = vunpack.c.h.b16 %v276
        %v902 = vunpack.c.l.b16 %v277
        %v903 = vunpack.c.h.b16 %v277
        %v904 = vunpack.c.l.b16 %v278
        %v905 = vunpack.c.h.b16 %v278
        %v906 = vunpack.c.l.b16 %v279
        %v907 = vunpack.c.h.b16 %v279
        %v908 = vunpack.c.l.b16 %v280
        %v909 = vunpack.c.h.b16 %v280
        %v910 = vunpack.c.l.b16 %v281
        %v911 = vunpack.c.h.b16 %v281
        %v912 = vunpack.c.l.b16 %v282
        %v913 = vunpack.c.h.b16 %v282
        %v914 = vunpack.c.l.b16 %v283
        %v915 = vunpack.c.h.b16 %v283
        %v916 = vunpack.c.l.b16 %v284
        %v917 = vunpack.c.h.b16 %v284
        %v918 = vunpack.c.l.b16 %v285
        %v919 = vunpack.c.h.b16 %v285
        %v920 = vunpack.c.l.b16 %v286
        %v921 = vunpack.c.h.b16 %v286
        %v922 = vunpack.c.l.b16 %v287
        %v923 = vunpack.c.h.b16 %v287
        %v924 = vunpack.c.l.b16 %v288
        %v925 = vunpack.c.h.b16 %v288
        %v926 = vunpack.c.l.b16 %v289
        %v927 = vunpack.c.h.b16 %v289
        %v928 = vunpack.c.l.b16 %v290
        %v929 = vunpack.c.h.b16 %v290
        %v930 = vunpack.c.l.b16 %v291
        %v931 = vunpack.c.h.b16 %v291
        %v932 = vunpack.c.l.b16 %v292
        %v933 = vunpack.c.h.b16 %v292
        %v934 = vunpack.c.l.b16 %v293
        %v935 = vunpack.c.h.b16 %v293
        %v936 = vunpack.c.l.b16 %v294
        %v937 = vunpack.c.h.b16 %v294
        %v938 = vunpack.c.l.b16 %v295
        %v939 = vunpack.c.h.b16 %v295
        %v940 = vunpack.c.l.b16 %v296
        %v941 = vunpack.c.h.b16 %v296
        %v942 = vunpack.c.l.b16 %v297
        %v943 = vunpack.c.h.b16 %v297
        %v944 = vunpack.c.l.b16 %v298
        %v945 = vunpack.c.h.b16 %v298
        %v946 = vunpack.c.l.b16 %v299
        %v947 = vunpack.c.h.b16 %v299
        %v948 = vunpack.c.l.b16 %v300
        %v949 = vunpack.c.h.b16 %v300
        %v950 = vunpack.c.l.b16 %v301
        %v951 = vunpack.c.h.b16 %v301
        %v952 = vunpack.c.l.b16 %v302
        %v953 = vunpack.c.h.b16 %v302
        %v954 = vunpack.c.l.b16 %v303
        %v955 = vunpack.c.h.b16 %v303
        %v956 = vunpack.c.l.b16 %v304
        %v957 = vunpack.c.h.b16 %v304
        %v958 = vunpack.c.l.b16 %v305
        %v959 = vunpack.c.h.b16 %v305
        %v960 = vunpack.c.l.b16 %v306
        %v961 = vunpack.c.h.b16 %v306
        %v962 = vunpack.c.l.b16 %v307
        %v963 = vunpack.c.h.b16 %v307
        %v964 = vunpack.c.l.b16 %v308
        %v965 = vunpack.c.h.b16 %v308
        %v966 = vunpack.c.l.b16 %v309
        %v967 = vunpack.c.h.b16 %v309
        %v968 = vunpack.c.l.b16 %v310
        %v969 = vunpack.c.h.b16 %v310
        %v970 = vunpack.c.l.b16 %v311
        %v971 = vunpack.c.h.b16 %v311
        %v972 = vunpack.c.l.b16 %v312
        %v973 = vunpack.c.h.b16 %v312
        %v974 = vunpack.c.l.b16 %v313
        %v975 = vunpack.c.h.b16 %v313
        %v976 = vunpack.c.l.b16 %v314
        %v977 = vunpack.c.h.b16 %v314
        %v978 = vunpack.c.l.b16 %v315
        %v979 = vunpack.c.h.b16 %v315
        %v980 = vunpack.c.l.b16 %v316
        %v981 = vunpack.c.h.b16 %v316
        %v982 = vunpack.c.l.b16 %v317
        %v983 = vunpack.c.h.b16 %v317
        %v984 = vunpack.c.l.b16 %v318
        %v985 = vunpack.c.h.b16 %v318
        %v986 = vunpack.c.l.b16 %v319
        %v987 = vunpack.c.h.b16 %v319
        %v988 = vunpack.c.l.b16 %v320
        %v989 = vunpack.c.h.b16 %v320
        %v990 = vunpack.c.l.b16 %v321
        %v991 = vunpack.c.h.b16 %v321
        %v992 = vunpack.c.l.b16 %v322
        %v993 = vunpack.c.h.b16 %v322
        %v994 = vunpack.c.l.b16 %v323
        %v995 = vunpack.c.h.b16 %v323
        %v996 = vunpack.c.l.b16 %v324
        %v997 = vunpack.c.h.b16 %v324
        %v998 = vunpack.c.l.b16 %v325
        %v999 = vunpack.c.h.b16 %v325
        %v1000 = vunpack.c.l.b16 %v326
        %v1001 = vunpack.c.h.b16 %v326
        %v1002 = vunpack.c.l.b16 %v327
        %v1003 = vunpack.c.h.b16 %v327
        %v1004 = vunpack.c.l.b16 %v328
        %v1005 = vunpack.c.h.b16 %v328
        %v1006 = vunpack.c.l.b16 %v329
        %v1007 = vunpack.c.h.b16 %v329
        %v1008 = vunpack.c.l.b16 %v330
        %v1009 = vunpack.c.h.b16 %v330
        %v1010 = vunpack.c.l.b16 %v331
        %v1011 = vunpack.c.h.b16 %v331
        %v1012 = vunpack.c.l.b16 %v332
        %v1013 = vunpack.c.h.b16 %v332
        %v1014 = vunpack.c.l.b16 %v333
        %v1015 = vunpack.c.h.b16 %v333
        %v1016 = vunpack.c.l.b16 %v334
        %v1017 = vunpack.c.h.b16 %v334
        %v1018 = vunpack.c.l.b16 %v335
        %v1019 = vunpack.c.h.b16 %v335
        %v1020 = vunpack.c.l.b16 %v336
        %v1021 = vunpack.c.h.b16 %v336
        %v1022 = vunpack.c.l.b16 %v337
        %v1023 = vunpack.c.h.b16 %v337
        %v1024 = vunpack.c.l.b16 %v338
        %v1025 = vunpack.c.h.b16 %v338
        %v1026 = vunpack.c.l.b16 %v339
        %v1027 = vunpack.c.h.b16 %v339
        %v1028 = vunpack.c.l.b16 %v340
        %v1029 = vunpack.c.h.b16 %v340
        %v1030 = vunpack.c.l.b16 %v341
        %v1031 = vunpack.c.h.b16 %v341
        %v1032 = vunpack.c.l.b16 %v342
        %v1033 = vunpack.c.h.b16 %v342
        %v1034 = vunpack.c.l.b16 %v343
        %v1035 = vunpack.c.h.b16 %v343
        %v1036 = vunpack.c.l.b16 %v344
        %v1037 = vunpack.c.h.b16 %v344
        %v1038 = vunpack.c.l.b16 %v345
        %v1039 = vunpack.c.h.b16 %v345
        %v1040 = vunpack.c.l.b16 %v346
        %v1041 = vunpack.c.h.b16 %v346
        %v1042 = vunpack.c.l.b16 %v347
        %v1043 = vunpack.c.h.b16 %v347
        %v1044 = vunpack.c.l.b16 %v348
        %v1045 = vunpack.c.h.b16 %v348
        %v1046 = vunpack.c.l.b16 %v349
        %v1047 = vunpack.c.h.b16 %v349
        %v1048 = vunpack.c.l.b16 %v350
        %v1049 = vunpack.c.h.b16 %v350
        %v1050 = vunpack.c.l.b16 %v351
        %v1051 = vunpack.c.h.b16 %v351
        %v1052 = vunpack.c.l.b16 %v352
        %v1053 = vunpack.c.h.b16 %v352
        %v1054 = vunpack.c.l.b16 %v353
        %v1055 = vunpack.c.h.b16 %v353
        %v1056 = vunpack.c.l.b16 %v354
        %v1057 = vunpack.c.h.b16 %v354
        %v1058 = vunpack.c.l.b16 %v355
        %v1059 = vunpack.c.h.b16 %v355
        %v1060 = vunpack.c.l.b16 %v356
        %v1061 = vunpack.c.h.b16 %v356
        %v1062 = vunpack.c.l.b16 %v357
        %v1063 = vunpack.c.h.b16 %v357
        %v1064 = vunpack.c.l.b16 %v358
        %v1065 = vunpack.c.h.b16 %v358
        %v1066 = vunpack.c.l.b16 %v359
        %v1067 = vunpack.c.h.b16 %v359
        %v1068 = vunpack.c.l.b16 %v360
        %v1069 = vunpack.c.h.b16 %v360
        %v1070 = vunpack.c.l.b16 %v361
        %v1071 = vunpack.c.h.b16 %v361
        %v1072 = vunpack.c.l.b16 %v362
        %v1073 = vunpack.c.h.b16 %v362
        %v1074 = vunpack.c.l.b16 %v363
        %v1075 = vunpack.c.h.b16 %v363
        %v1076 = vunpack.c.l.b16 %v364
        %v1077 = vunpack.c.h.b16 %v364
        %v1078 = vunpack.c.l.b16 %v365
        %v1079 = vunpack.c.h.b16 %v365
        %v1080 = vunpack.c.l.b16 %v366
        %v1081 = vunpack.c.h.b16 %v366
        %v1082 = vunpack.c.l.b16 %v367
        %v1083 = vunpack.c.h.b16 %v367
        %v1084 = vunpack.c.l.b16 %v368
        %v1085 = vunpack.c.h.b16 %v368
        %v1086 = vunpack.c.l.b16 %v369
        %v1087 = vunpack.c.h.b16 %v369
        %v1088 = vunpack.c.l.b16 %v370
        %v1089 = vunpack.c.h.b16 %v370
        %v1090 = vunpack.c.l.b16 %v371
        %v1091 = vunpack.c.h.b16 %v371
        %v1092 = vunpack.c.l.b16 %v372
        %v1093 = vunpack.c.h.b16 %v372
        %v1094 = vunpack.c.l.b16 %v373
        %v1095 = vunpack.c.h.b16 %v373
        %v1096 = vunpack.c.l.b16 %v374
        %v1097 = vunpack.c.h.b16 %v374
        %v1098 = vunpack.c.l.b16 %v375
        %v1099 = vunpack.c.h.b16 %v375
        %v1100 = vunpack.c.l.b16 %v376
        %v1101 = vunpack.c.h.b16 %v376
        %v1102 = vunpack.c.l.b16 %v377
        %v1103 = vunpack.c.h.b16 %v377
        %v1104 = vunpack.c.l.b16 %v378
        %v1105 = vunpack.c.h.b16 %v378
        %v1106 = vunpack.c.l.b16 %v379
        %v1107 = vunpack.c.h.b16 %v379
        %v1108 = vunpack.c.l.b16 %v380
        %v1109 = vunpack.c.h.b16 %v380
        %v1110 = vunpack.c.l.b16 %v381
        %v1111 = vunpack.c.h.b16 %v381
        %v1112 = vunpack.c.l.b16 %v382
        %v1113 = vunpack.c.h.b16 %v382
        %v1114 = vunpack.c.l.b16 %v383
        %v1115 = vunpack.c.h.b16 %v383
        %v1116 = vunpack.c.l.b16 %v384
        %v1117 = vunpack.c.h.b16 %v384
        %v1118 = vunpack.c.l.b16 %v385
        %v1119 = vunpack.c.h.b16 %v385
        %v1120 = vunpack.c.l.b16 %v386
        %v1121 = vunpack.c.h.b16 %v386
        %v1122 = vunpack.c.l.b16 %v387
        %v1123 = vunpack.c.h.b16 %v387
        %v1124 = vunpack.c.l.b16 %v388
        %v1125 = vunpack.c.h.b16 %v388
        %v1126 = vunpack.c.l.b16 %v389
        %v1127 = vunpack.c.h.b16 %v389
        %v1128 = vunpack.c.l.b16 %v390
        %v1129 = vunpack.c.h.b16 %v390
        %v1130 = vunpack.c.l.b16 %v391
        %v1131 = vunpack.c.h.b16 %v391
        %v1132 = vunpack.c.l.b16 %v392
        %v1133 = vunpack.c.h.b16 %v392
        %v1134 = vunpack.c.l.b16 %v393
        %v1135 = vunpack.c.h.b16 %v393
        %v1136 = vunpack.c.l.b16 %v394
        %v1137 = vunpack.c.h.b16 %v394
        %v1138 = vunpack.c.l.b16 %v395
        %v1139 = vunpack.c.h.b16 %v395
        %v1140 = vunpack.c.l.b16 %v396
        %v1141 = vunpack.c.h.b16 %v396
        %v1142 = vunpack.c.l.b16 %v397
        %v1143 = vunpack.c.h.b16 %v397
        %v1144 = vunpack.c.l.b16 %v398
        %v1145 = vunpack.c.h.b16 %v398
        %v1146 = vunpack.c.l.b16 %v399
        %v1147 = vunpack.c.h.b16 %v399
        %v1148 = vunpack.c.l.b16 %v400
        %v1149 = vunpack.c.h.b16 %v400
        %v1150 = vunpack.c.l.b16 %v401
        %v1151 = vunpack.c.h.b16 %v401
        %v1152 = vunpack.c.l.b16 %v402
        %v1153 = vunpack.c.h.b16 %v402
        %v1154 = vunpack.c.l.b16 %v403
        %v1155 = vunpack.c.h.b16 %v403
        %v1156 = vunpack.c.l.b16 %v404
        %v1157 = vunpack.c.h.b16 %v404
        %v1158 = vunpack.c.l.b16 %v405
        %v1159 = vunpack.c.h.b16 %v405
        %v1160 = vunpack.c.l.b16 %v406
        %v1161 = vunpack.c.h.b16 %v406
        %v1162 = vunpack.c.l.b16 %v407
        %v1163 = vunpack.c.h.b16 %v407
        %v1164 = vunpack.c.l.b16 %v408
        %v1165 = vunpack.c.h.b16 %v408
        %v1166 = vunpack.c.l.b16 %v409
        %v1167 = vunpack.c.h.b16 %v409
        %v1168 = vunpack.c.l.b16 %v410
        %v1169 = vunpack.c.h.b16 %v410
        %v1170 = vunpack.c.l.b16 %v411
        %v1171 = vunpack.c.h.b16 %v411
        %v1172 = vunpack.c.l.b16 %v412
        %v1173 = vunpack.c.h.b16 %v412
        %v1174 = vunpack.c.l.b16 %v413
        %v1175 = vunpack.c.h.b16 %v413
        %v1176 = vunpack.c.l.b16 %v414
        %v1177 = vunpack.c.h.b16 %v414
        %v1178 = vunpack.c.l.b16 %v415
        %v1179 = vunpack.c.h.b16 %v415
        %v1180 = vunpack.c.l.b16 %v416
        %v1181 = vunpack.c.h.b16 %v416
        %v1182 = vunpack.c.l.b16 %v417
        %v1183 = vunpack.c.h.b16 %v417
        %v1184 = vunpack.c.l.b16 %v418
        %v1185 = vunpack.c.h.b16 %v418
        %v1186 = vunpack.c.l.b16 %v419
        %v1187 = vunpack.c.h.b16 %v419
        %v1188 = vunpack.c.l.b16 %v420
        %v1189 = vunpack.c.h.b16 %v420
        %v1190 = vunpack.c.l.b16 %v421
        %v1191 = vunpack.c.h.b16 %v421
        %v1192 = vunpack.c.l.b16 %v422
        %v1193 = vunpack.c.h.b16 %v422
        %v1194 = vunpack.c.l.b16 %v423
        %v1195 = vunpack.c.h.b16 %v423
        %v1196 = vunpack.c.l.b16 %v424
        %v1197 = vunpack.c.h.b16 %v424
        %v1198 = vunpack.c.l.b16 %v425
        %v1199 = vunpack.c.h.b16 %v425
        %v1200 = vunpack.c.l.b16 %v426
        %v1201 = vunpack.c.h.b16 %v426
        %v1202 = vunpack.c.l.b16 %v427
        %v1203 = vunpack.c.h.b16 %v427
        %v1204 = vunpack.c.l.b16 %v428
        %v1205 = vunpack.c.h.b16 %v428
        %v1206 = vunpack.c.l.b16 %v429
        %v1207 = vunpack.c.h.b16 %v429
        %v1208 = vunpack.c.l.b16 %v430
        %v1209 = vunpack.c.h.b16 %v430
        %v1210 = vunpack.c.l.b16 %v431
        %v1211 = vunpack.c.h.b16 %v431
        %v1212 = vunpack.c.l.b16 %v432
        %v1213 = vunpack.c.h.b16 %v432
        %v1214 = vunpack.c.l.b16 %v433
        %v1215 = vunpack.c.h.b16 %v433
        %v1216 = vunpack.c.l.b16 %v434
        %v1217 = vunpack.c.h.b16 %v434
        %v1218 = vunpack.c.l.b16 %v435
        %v1219 = vunpack.c.h.b16 %v435
        %v1220 = vunpack.c.l.b16 %v436
        %v1221 = vunpack.c.h.b16 %v436
        %v1222 = vunpack.c.l.b16 %v437
        %v1223 = vunpack.c.h.b16 %v437
        %v1224 = vunpack.c.l.b16 %v438
        %v1225 = vunpack.c.h.b16 %v438
        %v1226 = vunpack.c.l.b16 %v439
        %v1227 = vunpack.c.h.b16 %v439
        %v1228 = vunpack.c.l.b16 %v440
        %v1229 = vunpack.c.h.b16 %v440
        %v1230 = vunpack.c.l.b16 %v441
        %v1231 = vunpack.c.h.b16 %v441
        %v1232 = vunpack.c.l.b16 %v442
        %v1233 = vunpack.c.h.b16 %v442
        %v1234 = vunpack.c.l.b16 %v443
        %v1235 = vunpack.c.h.b16 %v443
        %v1236 = vunpack.c.l.b16 %v444
        %v1237 = vunpack.c.h.b16 %v444
        %v1238 = vunpack.c.l.b16 %v445
        %v1239 = vunpack.c.h.b16 %v445
        %v1240 = vunpack.c.l.b16 %v446
        %v1241 = vunpack.c.h.b16 %v446
        %v1242 = vunpack.c.l.b16 %v447
        %v1243 = vunpack.c.h.b16 %v447
        %v1244 = vunpack.c.l.b16 %v448
        %v1245 = vunpack.c.h.b16 %v448
        %v1246 = vunpack.c.l.b16 %v449
        %v1247 = vunpack.c.h.b16 %v449
        %v1248 = vunpack.c.l.b16 %v450
        %v1249 = vunpack.c.h.b16 %v450
        %v1250 = vunpack.c.l.b16 %v451
        %v1251 = vunpack.c.h.b16 %v451
        %v1252 = vunpack.c.l.b16 %v452
        %v1253 = vunpack.c.h.b16 %v452
        %v1254 = vunpack.c.l.b16 %v453
        %v1255 = vunpack.c.h.b16 %v453
        %v1256 = vunpack.c.l.b16 %v454
        %v1257 = vunpack.c.h.b16 %v454
        %v1258 = vunpack.c.l.b16 %v455
        %v1259 = vunpack.c.h.b16 %v455
        %v1260 = vunpack.c.l.b16 %v456
        %v1261 = vunpack.c.h.b16 %v456
        %v1262 = vunpack.c.l.b16 %v457
        %v1263 = vunpack.c.h.b16 %v457
        %v1264 = vunpack.c.l.b16 %v458
        %v1265 = vunpack.c.h.b16 %v458
        %v1266 = vunpack.c.l.b16 %v459
        %v1267 = vunpack.c.h.b16 %v459
        %v1268 = vunpack.c.l.b16 %v460
        %v1269 = vunpack.c.h.b16 %v460
        %v1270 = vunpack.c.l.b16 %v461
        %v1271 = vunpack.c.h.b16 %v461
        %v1272 = vunpack.c.l.b16 %v462
        %v1273 = vunpack.c.h.b16 %v462
        %v1274 = vunpack.c.l.b16 %v463
        %v1275 = vunpack.c.h.b16 %v463
        %v1276 = vunpack.c.l.b16 %v464
        %v1277 = vunpack.c.h.b16 %v464
        %v1278 = vunpack.c.l.b16 %v465
        %v1279 = vunpack.c.h.b16 %v465
        %v1280 = vunpack.c.l.b16 %v466
        %v1281 = vunpack.c.h.b16 %v466
        %v1282 = vunpack.c.l.b16 %v467
        %v1283 = vunpack.c.h.b16 %v467
        %v1284 = vunpack.c.l.b16 %v468
        %v1285 = vunpack.c.h.b16 %v468
        %v1286 = vunpack.c.l.b16 %v469
        %v1287 = vunpack.c.h.b16 %v469
        %v1288 = vunpack.c.l.b16 %v470
        %v1289 = vunpack.c.h.b16 %v470
        %v1290 = vunpack.c.l.b16 %v471
        %v1291 = vunpack.c.h.b16 %v471
        %v1292 = vunpack.c.l.b16 %v472
        %v1293 = vunpack.c.h.b16 %v472
        %v1294 = vunpack.c.l.b16 %v473
        %v1295 = vunpack.c.h.b16 %v473
        %v1296 = vunpack.c.l.b16 %v474
        %v1297 = vunpack.c.h.b16 %v474
        %v1298 = vunpack.c.l.b16 %v475
        %v1299 = vunpack.c.h.b16 %v475
        %v1300 = vunpack.c.l.b16 %v476
        %v1301 = vunpack.c.h.b16 %v476
        %v1302 = vunpack.c.l.b16 %v477
        %v1303 = vunpack.c.h.b16 %v477
        %v1304 = vunpack.c.l.b16 %v478
        %v1305 = vunpack.c.h.b16 %v478
        %v1306 = vunpack.c.l.b16 %v479
        %v1307 = vunpack.c.h.b16 %v479
        %v1308 = vunpack.c.l.b16 %v480
        %v1309 = vunpack.c.h.b16 %v480
        %v1310 = vunpack.c.l.b16 %v481
        %v1311 = vunpack.c.h.b16 %v481
        %v1312 = vunpack.c.l.b16 %v482
        %v1313 = vunpack.c.h.b16 %v482
        %v1314 = vunpack.c.l.b16 %v483
        %v1315 = vunpack.c.h.b16 %v483
        %v1316 = vunpack.c.l.b16 %v484
        %v1317 = vunpack.c.h.b16 %v484
        %v1318 = vunpack.c.l.b16 %v485
        %v1319 = vunpack.c.h.b16 %v485
        %v1320 = vunpack.c.l.b16 %v486
        %v1321 = vunpack.c.h.b16 %v486
        %v1322 = vunpack.c.l.b16 %v487
        %v1323 = vunpack.c.h.b16 %v487
        %v1324 = vunpack.c.l.b16 %v488
        %v1325 = vunpack.c.h.b16 %v488
        %v1326 = vunpack.c.l.b16 %v489
        %v1327 = vunpack.c.h.b16 %v489
        %v1328 = vunpack.c.l.b16 %v490
        %v1329 = vunpack.c.h.b16 %v490
        %v1330 = vunpack.c.l.b16 %v491
        %v1331 = vunpack.c.h.b16 %v491
        %v1332 = vunpack.c.l.b16 %v492
        %v1333 = vunpack.c.h.b16 %v492
        %v1334 = vunpack.c.l.b16 %v493
        %v1335 = vunpack.c.h.b16 %v493
        %v1336 = vunpack.c.l.b16 %v494
        %v1337 = vunpack.c.h.b16 %v494
        %v1338 = vunpack.c.l.b16 %v495
        %v1339 = vunpack.c.h.b16 %v495
        %v1340 = vunpack.c.l.b16 %v496
        %v1341 = vunpack.c.h.b16 %v496
        %v1342 = vunpack.c.l.b16 %v497
        %v1343 = vunpack.c.h.b16 %v497
        %v1344 = vunpack.c.l.b16 %v498
        %v1345 = vunpack.c.h.b16 %v498
        %v1346 = vunpack.c.l.b16 %v499
        %v1347 = vunpack.c.h.b16 %v499
        %v1348 = vunpack.c.l.b16 %v500
        %v1349 = vunpack.c.h.b16 %v500
        %v1350 = vunpack.c.l.b16 %v501
        %v1351 = vunpack.c.h.b16 %v501
        %v1352 = vunpack.c.l.b16 %v502
        %v1353 = vunpack.c.h.b16 %v502
        %v1354 = vunpack.c.l.b16 %v503
        %v1355 = vunpack.c.h.b16 %v503
        %v1356 = vunpack.c.l.b16 %v504
        %v1357 = vunpack.c.h.b16 %v504
        %v1358 = vunpack.c.l.b16 %v505
        %v1359 = vunpack.c.h.b16 %v505
        %v1360 = vunpack.c.l.b16 %v506
        %v1361 = vunpack.c.h.b16 %v506
        %v1362 = vunpack.c.l.b16 %v507
        %v1363 = vunpack.c.h.b16 %v507
        %v1364 = vunpack.c.l.b16 %v508
        %v1365 = vunpack.c.h.b16 %v508
        %v1366 = vunpack.c.l.b16 %v509
        %v1367 = vunpack.c.h.b16 %v509
        %v1368 = vunpack.c.l.b16 %v510
        %v1369 = vunpack.c.h.b16 %v510
        %v1370 = vunpack.c.l.b16 %v511
        %v1371 = vunpack.c.h.b16 %v511
        %v1372 = vunpack.c.l.b16 %v512
        %v1373 = vunpack.c.h.b16 %v512
        %v1374 = vunpack.c.l.b16 %v513
        %v1375 = vunpack.c.h.b16 %v513
        %v1376 = vunpack.c.l.b16 %v514
        %v1377 = vunpack.c.h.b16 %v514
        %v1378 = vunpack.c.l.b16 %v515
        %v1379 = vunpack.c.h.b16 %v515
        %v1380 = vunpack.c.l.b16 %v516
        %v1381 = vunpack.c.h.b16 %v516
        %v1382 = vunpack.c.l.b16 %v517
        %v1383 = vunpack.c.h.b16 %v517
        %v1384 = vunpack.c.l.b16 %v518
        %v1385 = vunpack.c.h.b16 %v518
        %v1386 = vunpack.c.l.b16 %v519
        %v1387 = vunpack.c.h.b16 %v519
        %v1388 = vunpack.c.l.b16 %v520
        %v1389 = vunpack.c.h.b16 %v520
        %v1390 = vunpack.c.l.b16 %v521
        %v1391 = vunpack.c.h.b16 %v521
        %v1392 = vunpack.c.l.b16 %v522
        %v1393 = vunpack.c.h.b16 %v522
        %v1394 = vunpack.c.l.b16 %v523
        %v1395 = vunpack.c.h.b16 %v523
        %v1396 = vunpack.c.l.b16 %v524
        %v1397 = vunpack.c.h.b16 %v524
        %v1398 = vunpack.c.l.b16 %v525
        %v1399 = vunpack.c.h.b16 %v525
        %v1400 = vunpack.c.l.b16 %v526
        %v1401 = vunpack.c.h.b16 %v526
        %v1402 = vunpack.c.l.b16 %v527
        %v1403 = vunpack.c.h.b16 %v527
        %v1404 = vunpack.c.l.b16 %v528
        %v1405 = vunpack.c.h.b16 %v528
        %v1406 = vunpack.c.l.b16 %v529
        %v1407 = vunpack.c.h.b16 %v529
        %v1408 = vunpack.c.l.b16 %v530
        %v1409 = vunpack.c.h.b16 %v530
        %v1410 = vunpack.c.l.b16 %v531
        %v1411 = vunpack.c.h.b16 %v531
        %v1412 = vunpack.c.l.b16 %v532
        %v1413 = vunpack.c.h.b16 %v532
        %v1414 = vunpack.c.l.b16 %v533
        %v1415 = vunpack.c.h.b16 %v533
        %v1416 = vunpack.c.l.b16 %v534
        %v1417 = vunpack.c.h.b16 %v534
        %v1418 = vunpack.c.l.b16 %v535
        %v1419 = vunpack.c.h.b16 %v535
        %v1420 = vunpack.c.l.b16 %v536
        %v1421 = vunpack.c.h.b16 %v536
        %v1422 = vpack.c.b16 %v852, %v846
        %v1423 = vpack.c.b16 %v853, %v847
        %v1424 = vpack.c.b16 %v854, %v848
        %v1425 = vpack.c.b16 %v855, %v849
        %v1426 = vpack.c.b16 %v856, %v850
        %v1427 = vpack.c.b16 %v857, %v851
        %v1428 = vpack.c.b16 %v864, %v858
        %v1429 = vpack.c.b16 %v865, %v859
        %v1430 = vpack.c.b16 %v866, %v860
        %v1431 = vpack.c.b16 %v867, %v861
        %v1432 = vpack.c.b16 %v868, %v862
        %v1433 = vpack.c.b16 %v869, %v863
        %v1434 = vpack.c.b16 %v876, %v870
        %v1435 = vpack.c.b16 %v877, %v871
        %v1436 = vpack.c.b16 %v878, %v872
        %v1437 = vpack.c.b16 %v879, %v873
        %v1438 = vpack.c.b16 %v880, %v874
        %v1439 = vpack.c.b16 %v881, %v875
        %v1440 = vpack.c.b16 %v888, %v882
        %v1441 = vpack.c.b16 %v889, %v883
        %v1442 = vpack.c.b16 %v890, %v884
        %v1443 = vpack.c.b16 %v891, %v885
        %v1444 = vpack.c.b16 %v892, %v886
        %v1445 = vpack.c.b16 %v893, %v887
        %v1446 = vpack.c.b16 %v900, %v894
        %v1447 = vpack.c.b16 %v901, %v895
        %v1448 = vpack.c.b16 %v902, %v896
        %v1449 = vpack.c.b16 %v903, %v897
        %v1450 = vpack.c.b16 %v904, %v898
        %v1451 = vpack.c.b16 %v905, %v899
        %v1452 = vpack.c.b16 %v912, %v906
        %v1453 = vpack.c.b16 %v913, %v907
        %v1454 = vpack.c.b16 %v914, %v908
        %v1455 = vpack.c.b16 %v915, %v909
        %v1456 = vpack.c.b16 %v916, %v910
        %v1457 = vpack.c.b16 %v917, %v911
        %v1458 = vpack.c.b16 %v924, %v918
        %v1459 = vpack.c.b16 %v925, %v919
        %v1460 = vpack.c.b16 %v926, %v920
        %v1461 = vpack.c.b16 %v927, %v921
        %v1462 = vpack.c.b16 %v928, %v922
        %v1463 = vpack.c.b16 %v929, %v923
        %v1464 = vpack.c.b16 %v936, %v930
        %v1465 = vpack.c.b16 %v937, %v931
        %v1466 = vpack.c.b16 %v938, %v932
        %v1467 = vpack.c.b16 %v939, %v933
        %v1468 = vpack.c.b16 %v940, %v934
        %v1469 = vpack.c.b16 %v941, %v935
        %v1470 = vpack.c.b16 %v948, %v942
        %v1471 = vpack.c.b16 %v949, %v943
        %v1472 = vpack.c.b16 %v950, %v944
        %v1473 = vpack.c.b16 %v951, %v945
        %v1474 = vpack.c.b16 %v952, %v946
        %v1475 = vpack.c.b16 %v953, %v947
        %v1476 = vpack.c.b16 %v960, %v954
        %v1477 = vpack.c.b16 %v961, %v955
        %v1478 = vpack.c.b16 %v962, %v956
        %v1479 = vpack.c.b16 %v963, %v957
        %v1480 = vpack.c.b16 %v964, %v958
        %v1481 = vpack.c.b16 %v965, %v959
        %v1482 = vpack.c.b16 %v972, %v966
        %v1483 = vpack.c.b16 %v973, %v967
        %v1484 = vpack.c.b16 %v974, %v968
        %v1485 = vpack.c.b16 %v975, %v969
        %v1486 = vpack.c.b16 %v976, %v970
        %v1487 = vpack.c.b16 %v977, %v971
        %v1488 = vpack.c.b16 %v984, %v978
        %v1489 = vpack.c.b16 %v985, %v979
        %v1490 = vpack.c.b16 %v986, %v980
        %v1491 = vpack.c.b16 %v987, %v981
        %v1492 = vpack.c.b16 %v988, %v982
        %v1493 = vpack.c.b16 %v989, %v983
        %v1494 = vpack.c.b16 %v996, %v990
        %v1495 = vpack.c.b16 %v997, %v991
        %v1496 = vpack.c.b16 %v998, %v992
        %v1497 = vpack.c.b16 %v999, %v993
        %v1498 = vpack.c.b16 %v1000, %v994
        %v1499 = vpack.c.b16 %v1001, %v995
        %v1500 = vpack.c.b16 %v1008, %v1002
        %v1501 = vpack.c.b16 %v1009, %v1003
        %v1502 = vpack.c.b16 %v1010, %v1004
        %v1503 = vpack.c.b16 %v1011, %v1005
        %v1504 = vpack.c.b16 %v1012, %v1006
        %v1505 = vpack.c.b16 %v1013, %v1007
        %v1506 = vpack.c.b16 %v1020, %v1014
        %v1507 = vpack.c.b16 %v1021, %v1015
        %v1508 = vpack.c.b16 %v1022, %v1016
        %v1509 = vpack.c.b16 %v1023, %v1017
        %v1510 = vpack.c.b16 %v1024, %v1018
        %v1511 = vpack.c.b16 %v1025, %v1019
        %v1512 = vpack.c.b16 %v1032, %v1026
        %v1513 = vpack.c.b16 %v1033, %v1027
        %v1514 = vpack.c.b16 %v1034, %v1028
        %v1515 = vpack.c.b16 %v1035, %v1029
        %v1516 = vpack.c.b16 %v1036, %v1030
        %v1517 = vpack.c.b16 %v1037, %v1031
        %v1518 = vpack.c.b16 %v1044, %v1038
        %v1519 = vpack.c.b16 %v1045, %v1039
        %v1520 = vpack.c.b16 %v1046, %v1040
        %v1521 = vpack.c.b16 %v1047, %v1041
        %v1522 = vpack.c.b16 %v1048, %v1042
        %v1523 = vpack.c.b16 %v1049, %v1043
        %v1524 = vpack.c.b16 %v1056, %v1050
        %v1525 = vpack.c.b16 %v1057, %v1051
        %v1526 = vpack.c.b16 %v1058, %v1052
        %v1527 = vpack.c.b16 %v1059, %v1053
        %v1528 = vpack.c.b16 %v1060, %v1054
        %v1529 = vpack.c.b16 %v1061, %v1055
        %v1530 = vpack.c.b16 %v1068, %v1062
        %v1531 = vpack.c.b16 %v1069, %v1063
        %v1532 = vpack.c.b16 %v1070, %v1064
        %v1533 = vpack.c.b16 %v1071, %v1065
        %v1534 = vpack.c.b16 %v1072, %v1066
        %v1535 = vpack.c.b16 %v1073, %v1067
        %v1536 = vpack.c.b16 %v1080, %v1074
        %v1537 = vpack.c.b16 %v1081, %v1075
        %v1538 = vpack.c.b16 %v1082, %v1076
        %v1539 = vpack.c.b16 %v1083, %v1077
        %v1540 = vpack.c.b16 %v1084, %v1078
        %v1541 = vpack.c.b16 %v1085, %v1079
        %v1542 = vpack.c.b16 %v1092, %v1086
        %v1543 = vpack.c.b16 %v1093, %v1087
        %v1544 = vpack.c.b16 %v1094, %v1088
        %v1545 = vpack.c.b16 %v1095, %v1089
        %v1546 = vpack.c.b16 %v1096, %v1090
        %v1547 = vpack.c.b16 %v1097, %v1091
        %v1548 = vpack.c.b16 %v1104, %v1098
        %v1549 = vpack.c.b16 %v1105, %v1099
        %v1550 = vpack.c.b16 %v1106, %v1100
        %v1551 = vpack.c.b16 %v1107, %v1101
        %v1552 = vpack.c.b16 %v1108, %v1102
        %v1553 = vpack.c.b16 %v1109, %v1103
        %v1554 = vpack.c.b16 %v1116, %v1110
        %v1555 = vpack.c.b16 %v1117, %v1111
        %v1556 = vpack.c.b16 %v1118, %v1112
        %v1557 = vpack.c.b16 %v1119, %v1113
        %v1558 = vpack.c.b16 %v1120, %v1114
        %v1559 = vpack.c.b16 %v1121, %v1115
        %v1560 = vpack.c.b16 %v1128, %v1122
        %v1561 = vpack.c.b16 %v1129, %v1123
        %v1562 = vpack.c.b16 %v1130, %v1124
        %v1563 = vpack.c.b16 %v1131, %v1125
        %v1564 = vpack.c.b16 %v1132, %v1126
        %v1565 = vpack.c.b16 %v1133, %v1127
        %v1566 = vpack.c.b16 %v1140, %v1134
        %v1567 = vpack.c.b16 %v1141, %v1135
        %v1568 = vpack.c.b16 %v1142, %v1136
        %v1569 = vpack.c.b16 %v1143, %v1137
        %v1570 = vpack.c.b16 %v1144, %v1138
        %v1571 = vpack.c.b16 %v1145, %v1139
        %v1572 = vpack.c.b16 %v1152, %v1146
        %v1573 = vpack.c.b16 %v1153, %v1147
        %v1574 = vpack.c.b16 %v1154, %v1148
        %v1575 = vpack.c.b16 %v1155, %v1149
        %v1576 = vpack.c.b16 %v1156, %v1150
        %v1577 = vpack.c.b16 %v1157, %v1151
        %v1578 = vpack.c.b16 %v1164, %v1158
        %v1579 = vpack.c.b16 %v1165, %v1159
        %v1580 = vpack.c.b16 %v1166, %v1160
        %v1581 = vpack.c.b16 %v1167, %v1161
        %v1582 = vpack.c.b16 %v1168, %v1162
        %v1583 = vpack.c.b16 %v1169, %v1163
        %v1584 = vpack.c.b16 %v1176, %v1170
        %v1585 = vpack.c.b16 %v1177, %v1171
        %v1586 = vpack.c.b16 %v1178, %v1172
        %v1587 = vpack.c.b16 %v1179, %v1173
        %v1588 = vpack.c.b16 %v1180, %v1174
        %v1589 = vpack.c.b16 %v1181, %v1175
        %v1590 = vpack.c.b16 %v1188, %v1182
        %v1591 = vpack.c.b16 %v1189, %v1183
        %v1592 = vpack.c.b16 %v1190, %v1184
        %v1593 = vpack.c.b16 %v1191, %v1185
        %v1594 = vpack.c.b16 %v1192, %v1186
        %v1595 = vpack.c.b16 %v1193, %v1187
        %v1596 = vpack.c.b16 %v1200, %v1194
        %v1597 = vpack.c.b16 %v1201, %v1195
        %v1598 = vpack.c.b16 %v1202, %v1196
        %v1599 = vpack.c.b16 %v1203, %v1197
        %v1600 = vpack.c.b16 %v1204, %v1198
        %v1601 = vpack.c.b16 %v1205, %v1199
        %v1602 = vpack.c.b16 %v1212, %v1206
        %v1603 = vpack.c.b16 %v1213, %v1207
        %v1604 = vpack.c.b16 %v1214, %v1208
        %v1605 = vpack.c.b16 %v1215, %v1209
        %v1606 = vpack.c.b16 %v1216, %v1210
        %v1607 = vpack.c.b16 %v1217, %v1211
        %v1608 = vpack.c.b16 %v1224, %v1218
        %v1609 = vpack.c.b16 %v1225, %v1219
        %v1610 = vpack.c.b16 %v1226, %v1220
        %v1611 = vpack.c.b16 %v1227, %v1221
        %v1612 = vpack.c.b16 %v1228, %v1222
        %v1613 = vpack.c.b16 %v1229, %v1223
        %v1614 = vpack.c.b16 %v1236, %v1230
        %v1615 = vpack.c.b16 %v1237, %v1231
        %v1616 = vpack.c.b16 %v1238, %v1232
        %v1617 = vpack.c.b16 %v1239, %v1233
        %v1618 = vpack.c.b16 %v1240, %v1234
        %v1619 = vpack.c.b16 %v1241, %v1235
        %v1620 = vpack.c.b16 %v1248, %v1242
        %v1621 = vpack.c.b16 %v1249, %v1243
        %v1622 = vpack.c.b16 %v1250, %v1244
        %v1623 = vpack.c.b16 %v1251, %v1245
        %v1624 = vpack.c.b16 %v1252, %v1246
        %v1625 = vpack.c.b16 %v1253, %v1247
        %v1626 = vpack.c.b16 %v1260, %v1254
        %v1627 = vpack.c.b16 %v1261, %v1255
        %v1628 = vpack.c.b16 %v1262, %v1256
        %v1629 = vpack.c.b16 %v1263, %v1257
        %v1630 = vpack.c.b16 %v1264, %v1258
        %v1631 = vpack.c.b16 %v1265, %v1259
        %v1632 = vpack.c.b16 %v1272, %v1266
        %v1633 = vpack.c.b16 %v1273, %v1267
        %v1634 = vpack.c.b16 %v1274, %v1268
        %v1635 = vpack.c.b16 %v1275, %v1269
        %v1636 = vpack.c.b16 %v1276, %v1270
        %v1637 = vpack.c.b16 %v1277, %v1271
        %v1638 = vpack.c.b16 %v1284, %v1278
        %v1639 = vpack.c.b16 %v1285, %v1279
        %v1640 = vpack.c.b16 %v1286, %v1280
        %v1641 = vpack.c.b16 %v1287, %v1281
        %v1642 = vpack.c.b16 %v1288, %v1282
        %v1643 = vpack.c.b16 %v1289, %v1283
        %v1644 = vpack.c.b16 %v1296, %v1290
        %v1645 = vpack.c.b16 %v1297, %v1291
        %v1646 = vpack.c.b16 %v1298, %v1292
        %v1647 = vpack.c.b16 %v1299, %v1293
        %v1648 = vpack.c.b16 %v1300, %v1294
        %v1649 = vpack.c.b16 %v1301, %v1295
        %v1650 = vpack.c.b16 %v1308, %v1302
        %v1651 = vpack.c.b16 %v1309, %v1303
        %v1652 = vpack.c.b16 %v1310, %v1304
        %v1653 = vpack.c.b16 %v1311, %v1305
        %v1654 = vpack.c.b16 %v1312, %v1306
        %v1655 = vpack.c.b16 %v1313, %v1307
        %v1656 = vpack.c.b16 %v1320, %v1314
        %v1657 = vpack.c.b16 %v1321, %v1315
        %v1658 = vpack.c.b16 %v1322, %v1316
        %v1659 = vpack.c.b16 %v1323, %v1317
        %v1660 = vpack.c.b16 %v1324, %v1318
        %v1661 = vpack.c.b16 %v1325, %v1319
        %v1662 = vpack.c.b16 %v1332, %v1326
        %v1663 = vpack.c.b16 %v1333, %v1327
        %v1664 = vpack.c.b16 %v1334, %v1328
        %v1665 = vpack.c.b16 %v1335, %v1329
        %v1666 = vpack.c.b16 %v1336, %v1330
        %v1667 = vpack.c.b16 %v1337, %v1331
        %v1668 = vpack.c.b16 %v1344, %v1338
        %v1669 = vpack.c.b16 %v1345, %v1339
        %v1670 = vpack.c.b16 %v1346, %v1340
        %v1671 = vpack.c.b16 %v1347, %v1341
        %v1672 = vpack.c.b16 %v1348, %v1342
        %v1673 = vpack.c.b16 %v1349, %v1343
        %v1674 = vpack.c.b16 %v1356, %v1350
        %v1675 = vpack.c.b16 %v1357, %v1351
        %v1676 = vpack.c.b16 %v1358, %v1352
        %v1677 = vpack.c.b16 %v1359, %v1353
        %v1678 = vpack.c.b16 %v1360, %v1354
        %v1679 = vpack.c.b16 %v1361, %v1355
        %v1680 = vpack.c.b16 %v1368, %v1362
        %v1681 = vpack.c.b16 %v1369, %v1363
        %v1682 = vpack.c.b16 %v1370, %v1364
        %v1683 = vpack.c.b16 %v1371, %v1365
        %v1684 = vpack.c.b16 %v1372, %v1366
        %v1685 = vpack.c.b16 %v1373, %v1367
        %v1686 = vpack.c.b16 %v1380, %v1374
        %v1687 = vpack.c.b16 %v1381, %v1375
        %v1688 = vpack.c.b16 %v1382, %v1376
        %v1689 = vpack.c.b16 %v1383, %v1377
        %v1690 = vpack.c.b16 %v1384, %v1378
        %v1691 = vpack.c.b16 %v1385, %v1379
        %v1692 = vpack.c.b16 %v1392, %v1386
        %v1693 = vpack.c.b16 %v1393, %v1387
        %v1694 = vpack.c.b16 %v1394, %v1388
        %v1695 = vpack.c.b16 %v1395, %v1389
        %v1696 = vpack.c.b16 %v1396, %v1390
        %v1697 = vpack.c.b16 %v1397, %v1391
        %v1698 = vpack.c.b16 %v1404, %v1398
        %v1699 = vpack.c.b16 %v1405, %v1399
        %v1700 = vpack.c.b16 %v1406, %v1400
        %v1701 = vpack.c.b16 %v1407, %v1401
        %v1702 = vpack.c.b16 %v1408, %v1402
        %v1703 = vpack.c.b16 %v1409, %v1403
        %v1704 = vpack.c.b16 %v1416, %v1410
        %v1705 = vpack.c.b16 %v1417, %v1411
        %v1706 = vpack.c.b16 %v1418, %v1412
        %v1707 = vpack.c.b16 %v1419, %v1413
        %v1708 = vpack.c.b16 %v1420, %v1414
        %v1709 = vpack.c.b16 %v1421, %v1415
        %1998 = vmatpush.bf16.msra.mxu0 %v1464
        %1999 = vmatpush.bf16.msra.mxu0 %v1458
        %2000 = vmatpush.bf16.msra.mxu0 %v1452
        %2001 = vmatpush.bf16.msra.mxu0 %v1446
        %2002 = vmatpush.bf16.msra.mxu0 %v1440
        %2003 = vmatpush.bf16.msra.mxu0 %v1434
        %2004 = vmatpush.bf16.msra.mxu0 %v1428
        %2005 = vmatpush.bf16.msra.mxu0 %v1422
        %2006 = vmatmul.bf16.gmra.mxu0 %v546
        %v2007 = vpop.f32.mrf.mxu0
        %v2008 = vadd.f32 0.0, %v2007
        %v2009 = vpop.f32.mrf.mxu0
        %2010 = vdwg.mxu0
        %2011 = vmatpush.bf16.msra.mxu0 %v1512
        %2012 = vmatpush.bf16.msra.mxu0 %v1506
        %2013 = vmatpush.bf16.msra.mxu0 %v1500
        %2014 = vmatpush.bf16.msra.mxu0 %v1494
        %2015 = vmatpush.bf16.msra.mxu0 %v1488
        %2016 = vmatpush.bf16.msra.mxu0 %v1482
        %2017 = vmatpush.bf16.msra.mxu0 %v1476
        %2018 = vmatpush.bf16.msra.mxu0 %v1470
        %2019 = vmatmul.bf16.gmra.mxu0 %v547
        %v2020 = vpop.f32.mrf.mxu0
        %v2021 = vadd.f32 %v2008, %v2020
        %v2022 = vpop.f32.mrf.mxu0
        %2023 = vdwg.mxu0
        %2024 = vmatpush.bf16.msra.mxu0 %v1560
        %2025 = vmatpush.bf16.msra.mxu0 %v1554
        %2026 = vmatpush.bf16.msra.mxu0 %v1548
        %2027 = vmatpush.bf16.msra.mxu0 %v1542
        %2028 = vmatpush.bf16.msra.mxu0 %v1536
        %2029 = vmatpush.bf16.msra.mxu0 %v1530
        %2030 = vmatpush.bf16.msra.mxu0 %v1524
        %2031 = vmatpush.bf16.msra.mxu0 %v1518
        %2032 = vmatmul.bf16.gmra.mxu0 %v548
        %v2033 = vpop.f32.mrf.mxu0
        %v2034 = vadd.f32 %v2021, %v2033
        %v2035 = vpop.f32.mrf.mxu0
        %2036 = vdwg.mxu0
        %2037 = vmatpush.bf16.msra.mxu0 %v1608
        %2038 = vmatpush.bf16.msra.mxu0 %v1602
        %2039 = vmatpush.bf16.msra.mxu0 %v1596
        %2040 = vmatpush.bf16.msra.mxu0 %v1590
        %2041 = vmatpush.bf16.msra.mxu0 %v1584
        %2042 = vmatpush.bf16.msra.mxu0 %v1578
        %2043 = vmatpush.bf16.msra.mxu0 %v1572
        %2044 = vmatpush.bf16.msra.mxu0 %v1566
        %2045 = vmatmul.bf16.gmra.mxu0 %v549
        %v2046 = vpop.f32.mrf.mxu0
        %v2047 = vadd.f32 %v2034, %v2046
        %v2048 = vpop.f32.mrf.mxu0
        %2049 = vdwg.mxu0
        %2050 = vmatpush.bf16.msra.mxu0 %v1656
        %2051 = vmatpush.bf16.msra.mxu0 %v1650
        %2052 = vmatpush.bf16.msra.mxu0 %v1644
        %2053 = vmatpush.bf16.msra.mxu0 %v1638
        %2054 = vmatpush.bf16.msra.mxu0 %v1632
        %2055 = vmatpush.bf16.msra.mxu0 %v1626
        %2056 = vmatpush.bf16.msra.mxu0 %v1620
        %2057 = vmatpush.bf16.msra.mxu0 %v1614
        %2058 = vmatmul.bf16.gmra.mxu0 %v550
        %v2059 = vpop.f32.mrf.mxu0
        %v2060 = vadd.f32 %v2047, %v2059
        %v2061 = vpop.f32.mrf.mxu0
        %2062 = vdwg.mxu0
        %2063 = vmatpush.bf16.msra.mxu0 %v1704
        %2064 = vmatpush.bf16.msra.mxu0 %v1698
        %2065 = vmatpush.bf16.msra.mxu0 %v1692
        %2066 = vmatpush.bf16.msra.mxu0 %v1686
        %2067 = vmatpush.bf16.msra.mxu0 %v1680
        %2068 = vmatpush.bf16.msra.mxu0 %v1674
        %2069 = vmatpush.bf16.msra.mxu0 %v1668
        %2070 = vmatpush.bf16.msra.mxu0 %v1662
        %2071 = vmatmul.bf16.gmra.mxu0 %v551
        %v2072 = vpop.f32.mrf.mxu0
        %v2073 = vadd.f32 %v2060, %v2072
        %v2074 = vpop.f32.mrf.mxu0
        %2075 = vdwg.mxu0
        %2076 = vmatpush.bf16.msra.mxu0 %v1465
        %2077 = vmatpush.bf16.msra.mxu0 %v1459
        %2078 = vmatpush.bf16.msra.mxu0 %v1453
        %2079 = vmatpush.bf16.msra.mxu0 %v1447
        %2080 = vmatpush.bf16.msra.mxu0 %v1441
        %2081 = vmatpush.bf16.msra.mxu0 %v1435
        %2082 = vmatpush.bf16.msra.mxu0 %v1429
        %2083 = vmatpush.bf16.msra.mxu0 %v1423
        %2084 = vmatmul.bf16.gmra.mxu0 %v546
        %v2085 = vpop.f32.mrf.mxu0
        %v2086 = vadd.f32 0.0, %v2085
        %v2087 = vpop.f32.mrf.mxu0
        %2088 = vdwg.mxu0
        %2089 = vmatpush.bf16.msra.mxu0 %v1513
        %2090 = vmatpush.bf16.msra.mxu0 %v1507
        %2091 = vmatpush.bf16.msra.mxu0 %v1501
        %2092 = vmatpush.bf16.msra.mxu0 %v1495
        %2093 = vmatpush.bf16.msra.mxu0 %v1489
        %2094 = vmatpush.bf16.msra.mxu0 %v1483
        %2095 = vmatpush.bf16.msra.mxu0 %v1477
        %2096 = vmatpush.bf16.msra.mxu0 %v1471
        %2097 = vmatmul.bf16.gmra.mxu0 %v547
        %v2098 = vpop.f32.mrf.mxu0
        %v2099 = vadd.f32 %v2086, %v2098
        %v2100 = vpop.f32.mrf.mxu0
        %2101 = vdwg.mxu0
        %2102 = vmatpush.bf16.msra.mxu0 %v1561
        %2103 = vmatpush.bf16.msra.mxu0 %v1555
        %2104 = vmatpush.bf16.msra.mxu0 %v1549
        %2105 = vmatpush.bf16.msra.mxu0 %v1543
        %2106 = vmatpush.bf16.msra.mxu0 %v1537
        %2107 = vmatpush.bf16.msra.mxu0 %v1531
        %2108 = vmatpush.bf16.msra.mxu0 %v1525
        %2109 = vmatpush.bf16.msra.mxu0 %v1519
        %2110 = vmatmul.bf16.gmra.mxu0 %v548
        %v2111 = vpop.f32.mrf.mxu0
        %v2112 = vadd.f32 %v2099, %v2111
        %v2113 = vpop.f32.mrf.mxu0
        %2114 = vdwg.mxu0
        %2115 = vmatpush.bf16.msra.mxu0 %v1609
        %2116 = vmatpush.bf16.msra.mxu0 %v1603
        %2117 = vmatpush.bf16.msra.mxu0 %v1597
        %2118 = vmatpush.bf16.msra.mxu0 %v1591
        %2119 = vmatpush.bf16.msra.mxu0 %v1585
        %2120 = vmatpush.bf16.msra.mxu0 %v1579
        %2121 = vmatpush.bf16.msra.mxu0 %v1573
        %2122 = vmatpush.bf16.msra.mxu0 %v1567
        %2123 = vmatmul.bf16.gmra.mxu0 %v549
        %v2124 = vpop.f32.mrf.mxu0
        %v2125 = vadd.f32 %v2112, %v2124
        %v2126 = vpop.f32.mrf.mxu0
        %2127 = vdwg.mxu0
        %2128 = vmatpush.bf16.msra.mxu0 %v1657
        %2129 = vmatpush.bf16.msra.mxu0 %v1651
        %2130 = vmatpush.bf16.msra.mxu0 %v1645
        %2131 = vmatpush.bf16.msra.mxu0 %v1639
        %2132 = vmatpush.bf16.msra.mxu0 %v1633
        %2133 = vmatpush.bf16.msra.mxu0 %v1627
        %2134 = vmatpush.bf16.msra.mxu0 %v1621
        %2135 = vmatpush.bf16.msra.mxu0 %v1615
        %2136 = vmatmul.bf16.gmra.mxu0 %v550
        %v2137 = vpop.f32.mrf.mxu0
        %v2138 = vadd.f32 %v2125, %v2137
        %v2139 = vpop.f32.mrf.mxu0
        %2140 = vdwg.mxu0
        %2141 = vmatpush.bf16.msra.mxu0 %v1705
        %2142 = vmatpush.bf16.msra.mxu0 %v1699
        %2143 = vmatpush.bf16.msra.mxu0 %v1693
        %2144 = vmatpush.bf16.msra.mxu0 %v1687
        %2145 = vmatpush.bf16.msra.mxu0 %v1681
        %2146 = vmatpush.bf16.msra.mxu0 %v1675
        %2147 = vmatpush.bf16.msra.mxu0 %v1669
        %2148 = vmatpush.bf16.msra.mxu0 %v1663
        %2149 = vmatmul.bf16.gmra.mxu0 %v551
        %v2150 = vpop.f32.mrf.mxu0
        %v2151 = vadd.f32 %v2138, %v2150
        %v2152 = vpop.f32.mrf.mxu0
        %2153 = vdwg.mxu0
        %2154 = vmatpush.bf16.msra.mxu0 %v1466
        %2155 = vmatpush.bf16.msra.mxu0 %v1460
        %2156 = vmatpush.bf16.msra.mxu0 %v1454
        %2157 = vmatpush.bf16.msra.mxu0 %v1448
        %2158 = vmatpush.bf16.msra.mxu0 %v1442
        %2159 = vmatpush.bf16.msra.mxu0 %v1436
        %2160 = vmatpush.bf16.msra.mxu0 %v1430
        %2161 = vmatpush.bf16.msra.mxu0 %v1424
        %2162 = vmatmul.bf16.gmra.mxu0 %v546
        %v2163 = vpop.f32.mrf.mxu0
        %v2164 = vadd.f32 0.0, %v2163
        %v2165 = vpop.f32.mrf.mxu0
        %2166 = vdwg.mxu0
        %2167 = vmatpush.bf16.msra.mxu0 %v1514
        %2168 = vmatpush.bf16.msra.mxu0 %v1508
        %2169 = vmatpush.bf16.msra.mxu0 %v1502
        %2170 = vmatpush.bf16.msra.mxu0 %v1496
        %2171 = vmatpush.bf16.msra.mxu0 %v1490
        %2172 = vmatpush.bf16.msra.mxu0 %v1484
        %2173 = vmatpush.bf16.msra.mxu0 %v1478
        %2174 = vmatpush.bf16.msra.mxu0 %v1472
        %2175 = vmatmul.bf16.gmra.mxu0 %v547
        %v2176 = vpop.f32.mrf.mxu0
        %v2177 = vadd.f32 %v2164, %v2176
        %v2178 = vpop.f32.mrf.mxu0
        %2179 = vdwg.mxu0
        %2180 = vmatpush.bf16.msra.mxu0 %v1562
        %2181 = vmatpush.bf16.msra.mxu0 %v1556
        %2182 = vmatpush.bf16.msra.mxu0 %v1550
        %2183 = vmatpush.bf16.msra.mxu0 %v1544
        %2184 = vmatpush.bf16.msra.mxu0 %v1538
        %2185 = vmatpush.bf16.msra.mxu0 %v1532
        %2186 = vmatpush.bf16.msra.mxu0 %v1526
        %2187 = vmatpush.bf16.msra.mxu0 %v1520
        %2188 = vmatmul.bf16.gmra.mxu0 %v548
        %v2189 = vpop.f32.mrf.mxu0
        %v2190 = vadd.f32 %v2177, %v2189
        %v2191 = vpop.f32.mrf.mxu0
        %2192 = vdwg.mxu0
        %2193 = vmatpush.bf16.msra.mxu0 %v1610
        %2194 = vmatpush.bf16.msra.mxu0 %v1604
        %2195 = vmatpush.bf16.msra.mxu0 %v1598
        %2196 = vmatpush.bf16.msra.mxu0 %v1592
        %2197 = vmatpush.bf16.msra.mxu0 %v1586
        %2198 = vmatpush.bf16.msra.mxu0 %v1580
        %2199 = vmatpush.bf16.msra.mxu0 %v1574
        %2200 = vmatpush.bf16.msra.mxu0 %v1568
        %2201 = vmatmul.bf16.gmra.mxu0 %v549
        %v2202 = vpop.f32.mrf.mxu0
        %v2203 = vadd.f32 %v2190, %v2202
        %v2204 = vpop.f32.mrf.mxu0
        %2205 = vdwg.mxu0
        %2206 = vmatpush.bf16.msra.mxu0 %v1658
        %2207 = vmatpush.bf16.msra.mxu0 %v1652
        %2208 = vmatpush.bf16.msra.mxu0 %v1646
        %2209 = vmatpush.bf16.msra.mxu0 %v1640
        %2210 = vmatpush.bf16.msra.mxu0 %v1634
        %2211 = vmatpush.bf16.msra.mxu0 %v1628
        %2212 = vmatpush.bf16.msra.mxu0 %v1622
        %2213 = vmatpush.bf16.msra.mxu0 %v1616
        %2214 = vmatmul.bf16.gmra.mxu0 %v550
        %v2215 = vpop.f32.mrf.mxu0
        %v2216 = vadd.f32 %v2203, %v2215
        %v2217 = vpop.f32.mrf.mxu0
        %2218 = vdwg.mxu0
        %2219 = vmatpush.bf16.msra.mxu0 %v1706
        %2220 = vmatpush.bf16.msra.mxu0 %v1700
        %2221 = vmatpush.bf16.msra.mxu0 %v1694
        %2222 = vmatpush.bf16.msra.mxu0 %v1688
        %2223 = vmatpush.bf16.msra.mxu0 %v1682
        %2224 = vmatpush.bf16.msra.mxu0 %v1676
        %2225 = vmatpush.bf16.msra.mxu0 %v1670
        %2226 = vmatpush.bf16.msra.mxu0 %v1664
        %2227 = vmatmul.bf16.gmra.mxu0 %v551
        %v2228 = vpop.f32.mrf.mxu0
        %v2229 = vadd.f32 %v2216, %v2228
        %v2230 = vpop.f32.mrf.mxu0
        %2231 = vdwg.mxu0
        %2232 = vmatpush.bf16.msra.mxu0 %v1467
        %2233 = vmatpush.bf16.msra.mxu0 %v1461
        %2234 = vmatpush.bf16.msra.mxu0 %v1455
        %2235 = vmatpush.bf16.msra.mxu0 %v1449
        %2236 = vmatpush.bf16.msra.mxu0 %v1443
        %2237 = vmatpush.bf16.msra.mxu0 %v1437
        %2238 = vmatpush.bf16.msra.mxu0 %v1431
        %2239 = vmatpush.bf16.msra.mxu0 %v1425
        %2240 = vmatmul.bf16.gmra.mxu0 %v546
        %v2241 = vpop.f32.mrf.mxu0
        %v2242 = vadd.f32 0.0, %v2241
        %v2243 = vpop.f32.mrf.mxu0
        %2244 = vdwg.mxu0
        %2245 = vmatpush.bf16.msra.mxu0 %v1515
        %2246 = vmatpush.bf16.msra.mxu0 %v1509
        %2247 = vmatpush.bf16.msra.mxu0 %v1503
        %2248 = vmatpush.bf16.msra.mxu0 %v1497
        %2249 = vmatpush.bf16.msra.mxu0 %v1491
        %2250 = vmatpush.bf16.msra.mxu0 %v1485
        %2251 = vmatpush.bf16.msra.mxu0 %v1479
        %2252 = vmatpush.bf16.msra.mxu0 %v1473
        %2253 = vmatmul.bf16.gmra.mxu0 %v547
        %v2254 = vpop.f32.mrf.mxu0
        %v2255 = vadd.f32 %v2242, %v2254
        %v2256 = vpop.f32.mrf.mxu0
        %2257 = vdwg.mxu0
        %2258 = vmatpush.bf16.msra.mxu0 %v1563
        %2259 = vmatpush.bf16.msra.mxu0 %v1557
        %2260 = vmatpush.bf16.msra.mxu0 %v1551
        %2261 = vmatpush.bf16.msra.mxu0 %v1545
        %2262 = vmatpush.bf16.msra.mxu0 %v1539
        %2263 = vmatpush.bf16.msra.mxu0 %v1533
        %2264 = vmatpush.bf16.msra.mxu0 %v1527
        %2265 = vmatpush.bf16.msra.mxu0 %v1521
        %2266 = vmatmul.bf16.gmra.mxu0 %v548
        %v2267 = vpop.f32.mrf.mxu0
        %v2268 = vadd.f32 %v2255, %v2267
        %v2269 = vpop.f32.mrf.mxu0
        %2270 = vdwg.mxu0
        %2271 = vmatpush.bf16.msra.mxu0 %v1611
        %2272 = vmatpush.bf16.msra.mxu0 %v1605
        %2273 = vmatpush.bf16.msra.mxu0 %v1599
        %2274 = vmatpush.bf16.msra.mxu0 %v1593
        %2275 = vmatpush.bf16.msra.mxu0 %v1587
        %2276 = vmatpush.bf16.msra.mxu0 %v1581
        %2277 = vmatpush.bf16.msra.mxu0 %v1575
        %2278 = vmatpush.bf16.msra.mxu0 %v1569
        %2279 = vmatmul.bf16.gmra.mxu0 %v549
        %v2280 = vpop.f32.mrf.mxu0
        %v2281 = vadd.f32 %v2268, %v2280
        %v2282 = vpop.f32.mrf.mxu0
        %2283 = vdwg.mxu0
        %2284 = vmatpush.bf16.msra.mxu0 %v1659
        %2285 = vmatpush.bf16.msra.mxu0 %v1653
        %2286 = vmatpush.bf16.msra.mxu0 %v1647
        %2287 = vmatpush.bf16.msra.mxu0 %v1641
        %2288 = vmatpush.bf16.msra.mxu0 %v1635
        %2289 = vmatpush.bf16.msra.mxu0 %v1629
        %2290 = vmatpush.bf16.msra.mxu0 %v1623
        %2291 = vmatpush.bf16.msra.mxu0 %v1617
        %2292 = vmatmul.bf16.gmra.mxu0 %v550
        %v2293 = vpop.f32.mrf.mxu0
        %v2294 = vadd.f32 %v2281, %v2293
        %v2295 = vpop.f32.mrf.mxu0
        %2296 = vdwg.mxu0
        %2297 = vmatpush.bf16.msra.mxu0 %v1707
        %2298 = vmatpush.bf16.msra.mxu0 %v1701
        %2299 = vmatpush.bf16.msra.mxu0 %v1695
        %2300 = vmatpush.bf16.msra.mxu0 %v1689
        %2301 = vmatpush.bf16.msra.mxu0 %v1683
        %2302 = vmatpush.bf16.msra.mxu0 %v1677
        %2303 = vmatpush.bf16.msra.mxu0 %v1671
        %2304 = vmatpush.bf16.msra.mxu0 %v1665
        %2305 = vmatmul.bf16.gmra.mxu0 %v551
        %v2306 = vpop.f32.mrf.mxu0
        %v2307 = vadd.f32 %v2294, %v2306
        %v2308 = vpop.f32.mrf.mxu0
        %2309 = vdwg.mxu0
        %2310 = vmatpush.bf16.msra.mxu0 %v1468
        %2311 = vmatpush.bf16.msra.mxu0 %v1462
        %2312 = vmatpush.bf16.msra.mxu0 %v1456
        %2313 = vmatpush.bf16.msra.mxu0 %v1450
        %2314 = vmatpush.bf16.msra.mxu0 %v1444
        %2315 = vmatpush.bf16.msra.mxu0 %v1438
        %2316 = vmatpush.bf16.msra.mxu0 %v1432
        %2317 = vmatpush.bf16.msra.mxu0 %v1426
        %2318 = vmatmul.bf16.gmra.mxu0 %v546
        %v2319 = vpop.f32.mrf.mxu0
        %v2320 = vadd.f32 0.0, %v2319
        %v2321 = vpop.f32.mrf.mxu0
        %2322 = vdwg.mxu0
        %2323 = vmatpush.bf16.msra.mxu0 %v1516
        %2324 = vmatpush.bf16.msra.mxu0 %v1510
        %2325 = vmatpush.bf16.msra.mxu0 %v1504
        %2326 = vmatpush.bf16.msra.mxu0 %v1498
        %2327 = vmatpush.bf16.msra.mxu0 %v1492
        %2328 = vmatpush.bf16.msra.mxu0 %v1486
        %2329 = vmatpush.bf16.msra.mxu0 %v1480
        %2330 = vmatpush.bf16.msra.mxu0 %v1474
        %2331 = vmatmul.bf16.gmra.mxu0 %v547
        %v2332 = vpop.f32.mrf.mxu0
        %v2333 = vadd.f32 %v2320, %v2332
        %v2334 = vpop.f32.mrf.mxu0
        %2335 = vdwg.mxu0
        %2336 = vmatpush.bf16.msra.mxu0 %v1564
        %2337 = vmatpush.bf16.msra.mxu0 %v1558
        %2338 = vmatpush.bf16.msra.mxu0 %v1552
        %2339 = vmatpush.bf16.msra.mxu0 %v1546
        %2340 = vmatpush.bf16.msra.mxu0 %v1540
        %2341 = vmatpush.bf16.msra.mxu0 %v1534
        %2342 = vmatpush.bf16.msra.mxu0 %v1528
        %2343 = vmatpush.bf16.msra.mxu0 %v1522
        %2344 = vmatmul.bf16.gmra.mxu0 %v548
        %v2345 = vpop.f32.mrf.mxu0
        %v2346 = vadd.f32 %v2333, %v2345
        %v2347 = vpop.f32.mrf.mxu0
        %2348 = vdwg.mxu0
        %2349 = vmatpush.bf16.msra.mxu0 %v1612
        %2350 = vmatpush.bf16.msra.mxu0 %v1606
        %2351 = vmatpush.bf16.msra.mxu0 %v1600
        %2352 = vmatpush.bf16.msra.mxu0 %v1594
        %2353 = vmatpush.bf16.msra.mxu0 %v1588
        %2354 = vmatpush.bf16.msra.mxu0 %v1582
        %2355 = vmatpush.bf16.msra.mxu0 %v1576
        %2356 = vmatpush.bf16.msra.mxu0 %v1570
        %2357 = vmatmul.bf16.gmra.mxu0 %v549
        %v2358 = vpop.f32.mrf.mxu0
        %v2359 = vadd.f32 %v2346, %v2358
        %v2360 = vpop.f32.mrf.mxu0
        %2361 = vdwg.mxu0
        %2362 = vmatpush.bf16.msra.mxu0 %v1660
        %2363 = vmatpush.bf16.msra.mxu0 %v1654
        %2364 = vmatpush.bf16.msra.mxu0 %v1648
        %2365 = vmatpush.bf16.msra.mxu0 %v1642
        %2366 = vmatpush.bf16.msra.mxu0 %v1636
        %2367 = vmatpush.bf16.msra.mxu0 %v1630
        %2368 = vmatpush.bf16.msra.mxu0 %v1624
        %2369 = vmatpush.bf16.msra.mxu0 %v1618
        %2370 = vmatmul.bf16.gmra.mxu0 %v550
        %v2371 = vpop.f32.mrf.mxu0
        %v2372 = vadd.f32 %v2359, %v2371
        %v2373 = vpop.f32.mrf.mxu0
        %2374 = vdwg.mxu0
        %2375 = vmatpush.bf16.msra.mxu0 %v1708
        %2376 = vmatpush.bf16.msra.mxu0 %v1702
        %2377 = vmatpush.bf16.msra.mxu0 %v1696
        %2378 = vmatpush.bf16.msra.mxu0 %v1690
        %2379 = vmatpush.bf16.msra.mxu0 %v1684
        %2380 = vmatpush.bf16.msra.mxu0 %v1678
        %2381 = vmatpush.bf16.msra.mxu0 %v1672
        %2382 = vmatpush.bf16.msra.mxu0 %v1666
        %2383 = vmatmul.bf16.gmra.mxu0 %v551
        %v2384 = vpop.f32.mrf.mxu0
        %v2385 = vadd.f32 %v2372, %v2384
        %v2386 = vpop.f32.mrf.mxu0
        %2387 = vdwg.mxu0
        %2388 = vmatpush.bf16.msra.mxu0 %v1469
        %2389 = vmatpush.bf16.msra.mxu0 %v1463
        %2390 = vmatpush.bf16.msra.mxu0 %v1457
        %2391 = vmatpush.bf16.msra.mxu0 %v1451
        %2392 = vmatpush.bf16.msra.mxu0 %v1445
        %2393 = vmatpush.bf16.msra.mxu0 %v1439
        %2394 = vmatpush.bf16.msra.mxu0 %v1433
        %2395 = vmatpush.bf16.msra.mxu0 %v1427
        %2396 = vmatmul.bf16.gmra.mxu0 %v546
        %v2397 = vpop.f32.mrf.mxu0
        %v2398 = vadd.f32 0.0, %v2397
        %v2399 = vpop.f32.mrf.mxu0
        %2400 = vdwg.mxu0
        %2401 = vmatpush.bf16.msra.mxu0 %v1517
        %2402 = vmatpush.bf16.msra.mxu0 %v1511
        %2403 = vmatpush.bf16.msra.mxu0 %v1505
        %2404 = vmatpush.bf16.msra.mxu0 %v1499
        %2405 = vmatpush.bf16.msra.mxu0 %v1493
        %2406 = vmatpush.bf16.msra.mxu0 %v1487
        %2407 = vmatpush.bf16.msra.mxu0 %v1481
        %2408 = vmatpush.bf16.msra.mxu0 %v1475
        %2409 = vmatmul.bf16.gmra.mxu0 %v547
        %v2410 = vpop.f32.mrf.mxu0
        %v2411 = vadd.f32 %v2398, %v2410
        %v2412 = vpop.f32.mrf.mxu0
        %2413 = vdwg.mxu0
        %2414 = vmatpush.bf16.msra.mxu0 %v1565
        %2415 = vmatpush.bf16.msra.mxu0 %v1559
        %2416 = vmatpush.bf16.msra.mxu0 %v1553
        %2417 = vmatpush.bf16.msra.mxu0 %v1547
        %2418 = vmatpush.bf16.msra.mxu0 %v1541
        %2419 = vmatpush.bf16.msra.mxu0 %v1535
        %2420 = vmatpush.bf16.msra.mxu0 %v1529
        %2421 = vmatpush.bf16.msra.mxu0 %v1523
        %2422 = vmatmul.bf16.gmra.mxu0 %v548
        %v2423 = vpop.f32.mrf.mxu0
        %v2424 = vadd.f32 %v2411, %v2423
        %v2425 = vpop.f32.mrf.mxu0
        %2426 = vdwg.mxu0
        %2427 = vmatpush.bf16.msra.mxu0 %v1613
        %2428 = vmatpush.bf16.msra.mxu0 %v1607
        %2429 = vmatpush.bf16.msra.mxu0 %v1601
        %2430 = vmatpush.bf16.msra.mxu0 %v1595
        %2431 = vmatpush.bf16.msra.mxu0 %v1589
        %2432 = vmatpush.bf16.msra.mxu0 %v1583
        %2433 = vmatpush.bf16.msra.mxu0 %v1577
        %2434 = vmatpush.bf16.msra.mxu0 %v1571
        %2435 = vmatmul.bf16.gmra.mxu0 %v549
        %v2436 = vpop.f32.mrf.mxu0
        %v2437 = vadd.f32 %v2424, %v2436
        %v2438 = vpop.f32.mrf.mxu0
        %2439 = vdwg.mxu0
        %2440 = vmatpush.bf16.msra.mxu0 %v1661
        %2441 = vmatpush.bf16.msra.mxu0 %v1655
        %2442 = vmatpush.bf16.msra.mxu0 %v1649
        %2443 = vmatpush.bf16.msra.mxu0 %v1643
        %2444 = vmatpush.bf16.msra.mxu0 %v1637
        %2445 = vmatpush.bf16.msra.mxu0 %v1631
        %2446 = vmatpush.bf16.msra.mxu0 %v1625
        %2447 = vmatpush.bf16.msra.mxu0 %v1619
        %2448 = vmatmul.bf16.gmra.mxu0 %v550
        %v2449 = vpop.f32.mrf.mxu0
        %v2450 = vadd.f32 %v2437, %v2449
        %v2451 = vpop.f32.mrf.mxu0
        %2452 = vdwg.mxu0
        %2453 = vmatpush.bf16.msra.mxu0 %v1709
        %2454 = vmatpush.bf16.msra.mxu0 %v1703
        %2455 = vmatpush.bf16.msra.mxu0 %v1697
        %2456 = vmatpush.bf16.msra.mxu0 %v1691
        %2457 = vmatpush.bf16.msra.mxu0 %v1685
        %2458 = vmatpush.bf16.msra.mxu0 %v1679
        %2459 = vmatpush.bf16.msra.mxu0 %v1673
        %2460 = vmatpush.bf16.msra.mxu0 %v1667
        %2461 = vmatmul.bf16.gmra.mxu0 %v551
        %v2462 = vpop.f32.mrf.mxu0
        %v2463 = vadd.f32 %v2450, %v2462
        %v2464 = vpop.f32.mrf.mxu0
        %2465 = vdwg.mxu0
        %v2466 = vpack.c.bf16 %v2151, %v2073
        %v2467 = vpack.c.bf16 %v2307, %v2229
        %v2468 = vpack.c.bf16 %v2463, %v2385
        %v2469 = vld [vmem:[%s211] sm:$0xff]
        %v2470 = vld [vmem:[%s211 + $0x8] sm:$0xff]
        %v2471 = vld [vmem:[%s211 + $0x10] sm:$0xff]
        %v2475 = vunpack.c.l.b16 %v2466
        %v2476 = vunpack.c.h.b16 %v2466
        %v2477 = vunpack.c.l.b16 %v2467
        %v2478 = vunpack.c.h.b16 %v2467
        %v2479 = vunpack.c.l.b16 %v2468
        %v2480 = vunpack.c.h.b16 %v2468
        %v2481 = vpack.c.b16 %v2475, %v2475
        %v2482 = vpack.c.b16 %v2476, %v2476
        %v2483 = vpack.c.b16 %v2477, %v2477
        %v2484 = vpack.c.b16 %v2478, %v2478
        %v2485 = vpack.c.b16 %v2479, %v2479
        %v2486 = vpack.c.b16 %v2480, %v2480
        %v2496 = vunpack.c.l.b16 %v2469
        %v2497 = vunpack.c.h.b16 %v2469
        %v2498 = vunpack.c.l.b16 %v2470
        %v2499 = vunpack.c.h.b16 %v2470
        %v2500 = vunpack.c.l.b16 %v2471
        %v2501 = vunpack.c.h.b16 %v2471
        %v2502 = vpack.c.b16 %v2496, %v2496
        %v2503 = vpack.c.b16 %v2497, %v2497
        %v2504 = vpack.c.b16 %v2498, %v2498
        %v2505 = vpack.c.b16 %v2499, %v2499
        %v2506 = vpack.c.b16 %v2500, %v2500
        %v2507 = vpack.c.b16 %v2501, %v2501
        %2514 = vmatpush.bf16.xpose.msra.mxu0 0
        %2515 = vmatpush.bf16.xpose.msra.mxu0 0
        %2516 = vmatpush.bf16.xpose.msra.mxu0 0
        %2517 = vmatpush.bf16.xpose.msra.mxu0 0
        %2518 = vmatpush.bf16.xpose.msra.mxu0 0
        %2519 = vmatpush.bf16.xpose.msra.mxu0 0
        %2520 = vmatpush.bf16.xpose.msra.mxu0 0
        %2521 = vmatpush.bf16.xpose.msra.mxu0 %v2502
        %2522 = vmatmul.bf16.gmra.mxu0 %v2481
        %v2523 = vpop.f32.mrf.mxu0
        %v2524 = vadd.f32 0.0, %v2523
        %v2525 = vpop.f32.mrf.mxu0
        %2526 = vdwg.mxu0
        %2527 = vmatpush.bf16.xpose.msra.mxu0 0
        %2528 = vmatpush.bf16.xpose.msra.mxu0 0
        %2529 = vmatpush.bf16.xpose.msra.mxu0 0
        %2530 = vmatpush.bf16.xpose.msra.mxu0 0
        %2531 = vmatpush.bf16.xpose.msra.mxu0 0
        %2532 = vmatpush.bf16.xpose.msra.mxu0 0
        %2533 = vmatpush.bf16.xpose.msra.mxu0 0
        %2534 = vmatpush.bf16.xpose.msra.mxu0 %v2503
        %2535 = vmatmul.bf16.gmra.mxu0 %v2482
        %v2536 = vpop.f32.mrf.mxu0
        %v2537 = vadd.f32 %v2524, %v2536
        %v2538 = vpop.f32.mrf.mxu0
        %2539 = vdwg.mxu0
        %2540 = vmatpush.bf16.xpose.msra.mxu0 0
        %2541 = vmatpush.bf16.xpose.msra.mxu0 0
        %2542 = vmatpush.bf16.xpose.msra.mxu0 0
        %2543 = vmatpush.bf16.xpose.msra.mxu0 0
        %2544 = vmatpush.bf16.xpose.msra.mxu0 0
        %2545 = vmatpush.bf16.xpose.msra.mxu0 0
        %2546 = vmatpush.bf16.xpose.msra.mxu0 0
        %2547 = vmatpush.bf16.xpose.msra.mxu0 %v2504
        %2548 = vmatmul.bf16.gmra.mxu0 %v2483
        %v2549 = vpop.f32.mrf.mxu0
        %v2550 = vadd.f32 %v2537, %v2549
        %v2551 = vpop.f32.mrf.mxu0
        %2552 = vdwg.mxu0
        %2553 = vmatpush.bf16.xpose.msra.mxu0 0
        %2554 = vmatpush.bf16.xpose.msra.mxu0 0
        %2555 = vmatpush.bf16.xpose.msra.mxu0 0
        %2556 = vmatpush.bf16.xpose.msra.mxu0 0
        %2557 = vmatpush.bf16.xpose.msra.mxu0 0
        %2558 = vmatpush.bf16.xpose.msra.mxu0 0
        %2559 = vmatpush.bf16.xpose.msra.mxu0 0
        %2560 = vmatpush.bf16.xpose.msra.mxu0 %v2505
        %2561 = vmatmul.bf16.gmra.mxu0 %v2484
        %v2562 = vpop.f32.mrf.mxu0
        %v2563 = vadd.f32 %v2550, %v2562
        %v2564 = vpop.f32.mrf.mxu0
        %2565 = vdwg.mxu0
        %2566 = vmatpush.bf16.xpose.msra.mxu0 0
        %2567 = vmatpush.bf16.xpose.msra.mxu0 0
        %2568 = vmatpush.bf16.xpose.msra.mxu0 0
        %2569 = vmatpush.bf16.xpose.msra.mxu0 0
        %2570 = vmatpush.bf16.xpose.msra.mxu0 0
        %2571 = vmatpush.bf16.xpose.msra.mxu0 0
        %2572 = vmatpush.bf16.xpose.msra.mxu0 0
        %2573 = vmatpush.bf16.xpose.msra.mxu0 %v2506
        %2574 = vmatmul.bf16.gmra.mxu0 %v2485
        %v2575 = vpop.f32.mrf.mxu0
        %v2576 = vadd.f32 %v2563, %v2575
        %v2577 = vpop.f32.mrf.mxu0
        %2578 = vdwg.mxu0
        %2579 = vmatpush.bf16.xpose.msra.mxu0 0
        %2580 = vmatpush.bf16.xpose.msra.mxu0 0
        %2581 = vmatpush.bf16.xpose.msra.mxu0 0
        %2582 = vmatpush.bf16.xpose.msra.mxu0 0
        %2583 = vmatpush.bf16.xpose.msra.mxu0 0
        %2584 = vmatpush.bf16.xpose.msra.mxu0 0
        %2585 = vmatpush.bf16.xpose.msra.mxu0 0
        %2586 = vmatpush.bf16.xpose.msra.mxu0 %v2507
        %2587 = vmatmul.bf16.gmra.mxu0 %v2486
        %v2588 = vpop.f32.mrf.mxu0
        %v2589 = vadd.f32 %v2576, %v2588
        %v2590 = vpop.f32.mrf.mxu0
        %2591 = vdwg.mxu0
        %vm2592 = vcmask 64512
        %v2593 = vsel %vm2592, %v2589, -inf
        %v2594 = vrot.slane %v2593, 4
        %v2595 = vmax.f32 %v2593, %v2594
        %v2596 = vrot.slane %v2595, 2
        %v2597 = vmax.f32 %v2595, %v2596
        %v2598 = vrot.slane %v2597, 1
        %v2599 = vmax.f32 %v2597, %v2598
        %v2600 = vtanh.pop %v2599
        %v2601 = vlaneseq
        %v2602 = vshrl.u32 %v2601, 7
        %2604 = vset.pattern.permute.xlu0 %v2602
        %2605 = vperm.xlu0 %2604, %v2600
        %v2606 = vpop.permute.xlu0 %2605
        %v2607 = vunpack.c.l.bf16 %v2469
        %v2608 = vunpack.c.h.bf16 %v2469
        %v2609 = vunpack.c.l.bf16 %v2470
        %v2610 = vunpack.c.h.bf16 %v2470
        %v2611 = vunpack.c.l.bf16 %v2471
        %v2612 = vunpack.c.h.bf16 %v2471
        %v2613 = vmul.f32 %v2606, %v2607
        %v2614 = vmul.f32 %v2606, %v2608
        %v2615 = vmul.f32 %v2606, %v2609
        %v2616 = vmul.f32 %v2606, %v2610
        %v2617 = vmul.f32 %v2606, %v2611
        %v2618 = vmul.f32 %v2606, %v2612
        %v2619 = vrot.slane %v2613, 4
        %v2620 = vadd.f32 %v2613, %v2619
        %v2621 = vrot.slane %v2620, 2
        %v2622 = vadd.f32 %v2620, %v2621
        %v2623 = vrot.slane %v2622, 1
        %v2624 = vadd.f32 %v2622, %v2623
        %v2625 = vrot.slane %v2614, 4
        %v2626 = vadd.f32 %v2614, %v2625
        %v2627 = vrot.slane %v2626, 2
        %v2628 = vadd.f32 %v2626, %v2627
        %v2629 = vrot.slane %v2628, 1
        %v2630 = vadd.f32 %v2628, %v2629
        %v2631 = vrot.slane %v2615, 4
        %v2632 = vadd.f32 %v2615, %v2631
        %v2633 = vrot.slane %v2632, 2
        %v2634 = vadd.f32 %v2632, %v2633
        %v2635 = vrot.slane %v2634, 1
        %v2636 = vadd.f32 %v2634, %v2635
        %v2637 = vrot.slane %v2616, 4
        %v2638 = vadd.f32 %v2616, %v2637
        %v2639 = vrot.slane %v2638, 2
        %v2640 = vadd.f32 %v2638, %v2639
        %v2641 = vrot.slane %v2640, 1
        %v2642 = vadd.f32 %v2640, %v2641
        %v2643 = vrot.slane %v2617, 4
        %v2644 = vadd.f32 %v2617, %v2643
        %v2645 = vrot.slane %v2644, 2
        %v2646 = vadd.f32 %v2644, %v2645
        %v2647 = vrot.slane %v2646, 1
        %v2648 = vadd.f32 %v2646, %v2647
        %v2649 = vrot.slane %v2618, 4
        %v2650 = vadd.f32 %v2618, %v2649
        %v2651 = vrot.slane %v2650, 2
        %v2652 = vadd.f32 %v2650, %v2651
        %v2653 = vrot.slane %v2652, 1
        %v2654 = vadd.f32 %v2652, %v2653
        %v2655 = vadd.f32 %v2624, 0.0
        %v2656 = vadd.f32 %v2630, 0.0
        %v2657 = vadd.f32 %v2636, 0.0
        %v2658 = vadd.f32 %v2642, 0.0
        %v2659 = vadd.f32 %v2648, 0.0
        %v2660 = vadd.f32 %v2654, 0.0
        %v2667 = vrot.slane %v2656, 7
        %v2668 = vrot.slane %v2657, 6
        %v2669 = vrot.slane %v2658, 5
        %v2670 = vrot.slane %v2659, 4
        %v2671 = vrot.slane %v2660, 3
        %vm2672 = vcmask 1040384
        %v2673 = vsel %vm2672, %v2655, %v2667
        %vm2674 = vcmask 1041408
        %v2675 = vsel %vm2674, %v2673, %v2668
        %vm2676 = vcmask 1043459
        %v2677 = vsel %vm2676, %v2669, %v2670
        %vm2678 = vcmask 1044483
        %v2679 = vsel %vm2678, %v2677, %v2671
        %vm2680 = vcmask 1042432
        %v2681 = vsel %vm2680, %v2675, %v2679
        %v2683 = vlaneseq
        %vm2684 = vcmp.ge.s32.totalorder %v2683, 0
        %vm2685 = vcmp.lt.s32.totalorder %v2683, 768
        %vm2686 = vmand %vm2684, %vm2685
        %2687 = vst.msk [vmem:[%s244] sm:$0x3f] %vm2686, %v2681
        %s2688 = sand.u32 %s104, 1
        %s2689 = scalar_lea.sflag [#allocation4], %s2688
        %s2690 = sand.u32 %s104, 1
        %s2691 = smul.addr %s2690, 6
        %s2692 = scalar_lea.vmem [#allocation8], %s2691
        // Predicated region
        $region45: #{tpu_custom_call.1} parent=31 // pred_check
          %p2693 = pneg %p114
        $region46: #{tpu_custom_call.1} parent=31 // pred_check_branch
          %2695 = sbr.rel (%p2693) target = $region48
        $region47: #{tpu_custom_call.1} parent=31 // pred_region
          %2697 = vsyncadd %s2689, 0
          %s2698 = smul.addr %s23, 6
          %s2699 = scalar_lea.hbm %s3, %s2698
          %s2701 = sshll.u32 %s2692, 4
          %s2702 = int_to_ptr.vmem [resolvable:$true] %s2701
          %s2703 = sshll.u32 %s2699, 4
          %s2704 = int_to_ptr.hbm [resolvable:$true] %s2703
          %2706 = dma.vmem_to_hbm [thread:$0]  %s2702, 96, %s2704, %s2689
        $region48: #{tpu_custom_call.1} parent=31 // pred_fallthru
          _
      $region32: #{tpu_custom_call.1} parent=5 // pred_fallthru
        _
      %p2707 = scmp.le.s32.totalorder 2, %s18
      // Predicated region
      $region49: #{tpu_custom_call.1} parent=5 // pred_check
        %p2708 = pneg %p2707
      $region50: #{tpu_custom_call.1} parent=5 // pred_check_branch
        %2710 = sbr.rel (%p2708) target = $region52
      $region51: #{tpu_custom_call.1} parent=5 // pred_region
        %s2711 = ssub.s32 %s18, 2
        // Predicated region
        $region53: #{tpu_custom_call.1} parent=51 // pred_check
          %p2712 = pneg %p120
        $region54: #{tpu_custom_call.1} parent=51 // pred_check_branch
          %2714 = sbr.rel (%p2712) target = $region56
        $region55: #{tpu_custom_call.1} parent=51 // pred_region
          %s2715 = sand.u32 %s105, 1
          %s2716 = scalar_lea.sflag [#allocation4], %s2715
          %s2717 = sand.u32 %s105, 1
          %s2718 = smul.addr %s2717, 6
          %s2719 = scalar_lea.vmem [#allocation8], %s2718
          %2721 = dma.done %s2716, 96
        $region56: #{tpu_custom_call.1} parent=51 // pred_fallthru
          _
      $region52: #{tpu_custom_call.1} parent=5 // pred_fallthru
        _
    $region6: #{tpu_custom_call.1} parent=1 // loop_footer
      %s22 = sadd.s32 1, %s18
    $region7: #{tpu_custom_call.1} parent=1 // loop_footer_branch
      %17 = sbr.rel target = $region3
    $region8: #{tpu_custom_call.1} parent=1 // loop_exit
      _
    %2722 = vsyncpa [#allocation3], 1
    %s2723 = scalar_lea.sflag [#allocation3], 1
    %2724 = vsyncpa %s2723, 1
    %2725 = vsyncpa [#allocation6], 1
    %s2726 = scalar_lea.sflag [#allocation6], 1
    %2727 = vsyncpa %s2726, 1
    %2728 = vsyncpa [#allocation4], 1
    %s2729 = scalar_lea.sflag [#allocation4], 1
    %2730 = vsyncpa %s2729, 1

</llo_original>
